<compile_context>
chip_gen: v7x
topology: tpu7x:2x2x1
jax: 0.10.0
libtpu: 0.0.40
codegen_flags: <defaults>
</compile_context>

<pallas_src>
import functools
from types import SimpleNamespace

import jax
import jax.numpy as jnp
from jax.experimental import pallas as pl
from jax.experimental.pallas import tpu as pltpu


PRELU_ALPHA = 0.25  # nn.PReLU() default init


def _rup(x, m):
    return ((x + m - 1) // m) * m


# ----------------------------------------------------------------------------
# Fused forward kernel: conv (dense small GEMM) + encoders + pvrnn + decoders
# ----------------------------------------------------------------------------
def _fused_kernel(cols_ref, small_ref,
                  w_conv_ref, w_enc_ref, w_s2_ref, w_pv_ref, w_out1_ref, w_r2_ref,
                  bias_ref,
                  o_rgbd_ref, o_co_ref,
                  *, alpha, bp, ho, n_obs, n_act, n_r1, co_width, comm_other_w,
                  b_offs):
    off_conv, off_enc, off_s2, off_pv, off_out1, off_r2 = b_offs

    def mm(x, w_ref, boff):
        # bf16 MXU operands, f32 accumulate, f32 bias epilogue.
        n = w_ref.shape[-1]
        y = jnp.dot(x.astype(jnp.bfloat16), w_ref[...],
                    preferred_element_type=jnp.float32)
        return y + bias_ref[:, boff:boff + n]

    def prelu(y):
        return jnp.where(y > 0, y, alpha * y)

    # Conv2d(4->8, k3, s2, p1) + PReLU as a dense GEMM over rows = (ho, batch).
    conv2 = prelu(mm(cols_ref[...], w_conv_ref, off_conv))        # (Ho*Bp, Wo*C)

    # Relayout (Ho*Bp, Wo*C) -> (Bp, Ho*Wo*C): tile-aligned row slices (each
    # slice is one 8-sublane tile group) concatenated along lanes.  Flatten
    # order is (ho, wo, c), matching the packed rgbd_lin weight rows.
    conv_flat = jnp.concatenate(
        [conv2[i * bp:(i + 1) * bp, :] for i in range(ho)], axis=-1)

    small = small_ref[...]                       # (Bp, comm | other_pad | action_pad)

    # Obs_IN encoders (rgbd/comm/other) merged into one block-diag GEMM;
    # the GEMM output IS the concatenated encoding.
    x_enc = jnp.concatenate([conv_flat, small[:, :comm_other_w]], axis=-1)
    enc = prelu(mm(x_enc, w_enc_ref, off_enc))                    # (Bp, 56)

    # obs_lin + action_lin merged (block-diag).
    x2 = jnp.concatenate([enc, small[:, comm_other_w:]], axis=-1)  # (Bp, 64)
    s2 = prelu(mm(x2, w_s2_ref, off_s2))                           # (Bp, 48)
    obs = s2[:, :n_obs]
    act = s2[:, n_obs:n_obs + n_act]

    # pretend_pvrnn: Linear + PReLU
    h = prelu(mm(obs, w_pv_ref, off_pv))                           # (Bp, 32)

    # h_w_action = cat([h, action_encoding])
    hwa = jnp.concatenate([h, act], axis=-1)                       # (Bp, 48)

    # Obs_OUT first stage: [comm_out | other_out | pad->128 | rgbd_out_1].
    out1 = mm(hwa, w_out1_ref, off_out1)                           # (Bp, 192)
    o_co_ref[...] = out1[:, :co_width].astype(o_co_ref.dtype)      # comm+other
    r = prelu(out1[:, co_width:co_width + n_r1])                   # (Bp, 64)

    # rgbd decoder second stage (no activation on final output), lane-dense 1024.
    o_rgbd_ref[...] = mm(r, w_r2_ref, off_r2).astype(o_rgbd_ref.dtype)


# ----------------------------------------------------------------------------
# Host-side im2col: rows = (ho, batch), row-contents = (wo, cin, kh, kw).
# Batch padding is folded into the same jnp.pad as the spatial padding.
# ----------------------------------------------------------------------------
def build_conv_rows(rgbd, bp, k=3, stride=2, pad=1):
    B, C, H, W = rgbd.shape
    xp = jnp.pad(rgbd, ((0, bp - B), (0, 0), (pad, pad), (pad, pad)))
    Ho = (H + 2 * pad - k) // stride + 1
    Wo = (W + 2 * pad - k) // stride + 1
    patches = [xp[:, :, i:i + stride * Ho:stride, j:j + stride * Wo:stride]
               for i in range(k) for j in range(k)]
    cols = jnp.stack(patches, axis=2)               # (Bp, C, k*k, Ho, Wo)
    cols = cols.transpose(3, 0, 4, 1, 2)            # (Ho, Bp, Wo, C, k*k)
    return cols.reshape(Ho * bp, Wo * C * k * k), Ho, Wo


# Reference-only im2col: (B, P, Kc) with P = (ho, wo), Kc = (cin, kh, kw).
def im2col_ref(x, k=3, stride=2, pad=1):
    B, C, H, W = x.shape
    xp = jnp.pad(x, ((0, 0), (0, 0), (pad, pad), (pad, pad)))
    Ho = (H + 2 * pad - k) // stride + 1
    Wo = (W + 2 * pad - k) // stride + 1
    patches = [xp[:, :, i:i + stride * Ho:stride, j:j + stride * Wo:stride]
               for i in range(k) for j in range(k)]
    cols = jnp.stack(patches, axis=2)               # (B, C, k*k, Ho, Wo)
    cols = cols.transpose(0, 3, 4, 1, 2)            # (B, Ho, Wo, C, k*k)
    return cols.reshape(B, Ho * Wo, C * k * k)


# ----------------------------------------------------------------------------
# Deterministic parameter init (stand-in for init_weights)
# ----------------------------------------------------------------------------
def init_linear_params(key, fan_in, fan_out):
    kw, kb = jax.random.split(key)
    lim = 1.0 / jnp.sqrt(jnp.float32(fan_in))
    w = jax.random.uniform(kw, (fan_in, fan_out), jnp.float32, -lim, lim)
    b = jax.random.uniform(kb, (fan_out,), jnp.float32, -lim, lim)
    return w, b


def init_conv_params(key, cin, cout, k):
    kw, kb = jax.random.split(key)
    fan_in = cin * k * k
    lim = 1.0 / jnp.sqrt(jnp.float32(fan_in))
    w = jax.random.uniform(kw, (cout, cin, k, k), jnp.float32, -lim, lim)
    b = jax.random.uniform(kb, (cout,), jnp.float32, -lim, lim)
    return w, b


def build_params(key, args):
    H, W = args.image_size * 4, args.image_size
    Ho, Wo = H // 2, W // 2
    conv_c = 8
    rgbd_flat = conv_c * Ho * Wo
    comm_flat = args.max_comm_len * args.comm_shape

    keys = jax.random.split(key, 12)
    p = {}
    p["conv_w"], p["conv_b"] = init_conv_params(keys[0], 4, conv_c, 3)
    p["rgbd_lin"] = init_linear_params(keys[1], rgbd_flat, args.encode_rgbd_size)
    p["comm_lin"] = init_linear_params(keys[2], comm_flat, args.encode_comm_size)
    p["other_lin"] = init_linear_params(keys[3], args.other_shape, args.encode_other_size)
    obs_cat = args.encode_rgbd_size + args.encode_comm_size + args.encode_other_size
    p["obs_lin"] = init_linear_params(keys[4], obs_cat, args.encode_obs_size)
    p["action_lin"] = init_linear_params(keys[5], args.action_shape, args.encode_action_size)
    p["pvrnn_lin"] = init_linear_params(keys[6], args.encode_obs_size, args.pvrnn_mtrnn_size)
    h_w_action = args.pvrnn_mtrnn_size + args.encode_action_size
    p["rgbd_out_1"] = init_linear_params(keys[7], h_w_action, args.hidden_size)
    p["rgbd_out_2"] = init_linear_params(keys[8], args.hidden_size, 4 * H * W)
    p["comm_out"] = init_linear_params(keys[9], h_w_action, comm_flat)
    p["other_out"] = init_linear_params(keys[10], h_w_action, args.other_shape)
    return p


# ----------------------------------------------------------------------------
# Pack raw params into the fused/merged kernel operands (done once, host side)
# ----------------------------------------------------------------------------
def pack_params(p, args):
    H, W = args.image_size * 4, args.image_size
    Ho, Wo = H // 2, W // 2
    P = Ho * Wo
    conv_c = p["conv_w"].shape[0]
    k = p["conv_w"].shape[-1]
    Kc = p["conv_w"].shape[1] * k * k
    rgbd_flat = conv_c * P

    e_r, e_c, e_o = args.encode_rgbd_size, args.encode_comm_size, args.encode_other_size
    e_obs, e_a = args.encode_obs_size, args.encode_action_size
    hid = args.hidden_size
    comm_flat = args.max_comm_len * args.comm_shape
    other_pad = _rup(args.other_shape, 8)
    action_pad = _rup(args.action_shape, 8)

    # --- conv: small kron over the Wo axis only (~9 KiB, not 2.25 MiB) ---
    w_col = p["conv_w"].reshape(conv_c, Kc).T                    # (Kc, conv_c)
    w_conv = jnp.kron(jnp.eye(Wo, dtype=jnp.float32), w_col)     # (Wo*Kc, Wo*conv_c)
    b_conv = jnp.tile(p["conv_b"], Wo)                           # (Wo*conv_c,)

    # --- encoder stage: block_diag(rgbd_lin, comm_lin, other_lin) ---
    K_enc = rgbd_flat + comm_flat + other_pad
    N_enc = _rup(e_r + e_c + e_o, 8)
    w_enc = jnp.zeros((K_enc, N_enc), jnp.float32)
    w_enc = w_enc.at[:rgbd_flat, :e_r].set(p["rgbd_lin"][0])
    w_enc = w_enc.at[rgbd_flat:rgbd_flat + comm_flat, e_r:e_r + e_c].set(p["comm_lin"][0])
    w_enc = w_enc.at[rgbd_flat + comm_flat:rgbd_flat + comm_flat + args.other_shape,
                     e_r + e_c:e_r + e_c + e_o].set(p["other_lin"][0])
    b_enc = jnp.zeros((N_enc,), jnp.float32)
    b_enc = b_enc.at[:e_r].set(p["rgbd_lin"][1])
    b_enc = b_enc.at[e_r:e_r + e_c].set(p["comm_lin"][1])
    b_enc = b_enc.at[e_r + e_c:e_r + e_c + e_o].set(p["other_lin"][1])

    # --- stage 2: block_diag(obs_lin, action_lin) ---
    obs_cat = e_r + e_c + e_o
    K_s2 = N_enc + action_pad
    N_s2 = _rup(e_obs + e_a, 8)
    w_s2 = jnp.zeros((K_s2, N_s2), jnp.float32)
    w_s2 = w_s2.at[:obs_cat, :e_obs].set(p["obs_lin"][0])
    w_s2 = w_s2.at[N_enc:N_enc + args.action_shape, e_obs:e_obs + e_a].set(p["action_lin"][0])
    b_s2 = jnp.zeros((N_s2,), jnp.float32)
    b_s2 = b_s2.at[:e_obs].set(p["obs_lin"][1])
    b_s2 = b_s2.at[e_obs:e_obs + e_a].set(p["action_lin"][1])

    # --- pretend_pvrnn ---
    w_pv, b_pv = p["pvrnn_lin"]

    # --- Obs_OUT first stage: [comm_out | other_out | pad->128 | rgbd_out_1] ---
    hwa = args.pvrnn_mtrnn_size + e_a
    assert comm_flat + args.other_shape <= 128
    co_width = _rup(comm_flat + args.other_shape, 128)
    N_out1 = co_width + _rup(hid, 8)
    w_out1 = jnp.zeros((hwa, N_out1), jnp.float32)
    w_out1 = w_out1.at[:, :comm_flat].set(p["comm_out"][0])
    w_out1 = w_out1.at[:, comm_flat:comm_flat + args.other_shape].set(p["other_out"][0])
    w_out1 = w_out1.at[:, co_width:co_width + hid].set(p["rgbd_out_1"][0])
    b_out1 = jnp.zeros((N_out1,), jnp.float32)
    b_out1 = b_out1.at[:comm_flat].set(p["comm_out"][1])
    b_out1 = b_out1.at[comm_flat:comm_flat + args.other_shape].set(p["other_out"][1])
    b_out1 = b_out1.at[co_width:co_width + hid].set(p["rgbd_out_1"][1])

    # o_co lanes [comm_flat+other_shape, co_width) must be exactly zero: they are
    # produced ONLY by these padded weight columns + padded bias lanes.
    co_used = comm_flat + args.other_shape
    assert bool(jnp.all(w_out1[:, co_used:co_width] == 0.0))
    assert bool(jnp.all(b_out1[co_used:co_width] == 0.0))

    w_r2, b_r2 = p["rgbd_out_2"]

    # --- pack ALL biases into one (1, N_total) f32 vector, 128-aligned segments ---
    segs = [b_conv, b_enc, b_s2, b_pv, b_out1, b_r2]
    b_offs, off = [], 0
    for s in segs:
        b_offs.append(off)
        off += _rup(int(s.shape[0]), 128)
    b_all = jnp.zeros((1, off), jnp.float32)
    for o, s in zip(b_offs, segs):
        b_all = b_all.at[0, o:o + s.shape[0]].set(s)

    bf16 = jnp.bfloat16
    weights = {
        "w_conv": w_conv.astype(bf16),
        "w_enc": w_enc.astype(bf16),
        "w_s2": w_s2.astype(bf16),
        "w_pv": w_pv.astype(bf16),
        "w_out1": w_out1.astype(bf16),
        "w_r2": w_r2.astype(bf16),
        "b_all": b_all,                      # f32 epilogue biases
    }
    meta = SimpleNamespace(other_pad=other_pad, action_pad=action_pad,
                           co_width=co_width, b_offs=tuple(b_offs))
    return weights, meta


# ----------------------------------------------------------------------------
# Forward pass (mirrors In_And_Out.forward) — one fused pallas_call
# ----------------------------------------------------------------------------
def in_and_out_forward(weights, rgbd, comm, other, action, *, meta, args):
    B = rgbd.shape[0]
    H, W = args.image_size * 4, args.image_size
    L, Cc = args.max_comm_len, args.comm_shape
    comm_flat = L * Cc
    Bp = max(8, _rup(B, 8))                        # sublane-dense batch

    cols, Ho, Wo = build_conv_rows(rgbd, Bp)       # (Ho*Bp, Wo*Kc)
    cols = cols.astype(jnp.bfloat16)

    # One lane-packed slab for the three small inputs: [comm | other(pad) | action(pad)].
    comm_other_w = comm_flat + meta.other_pad
    small = jnp.zeros((Bp, comm_other_w + meta.action_pad), jnp.float32)
    small = small.at[:B, :comm_flat].set(comm.reshape(B, -1))
    small = small.at[:B, comm_flat:comm_flat + args.other_shape].set(other)
    small = small.at[:B, comm_other_w:comm_other_w + args.action_shape].set(action)

    out_rgbd_dim = 4 * H * W
    kern = functools.partial(
        _fused_kernel, alpha=PRELU_ALPHA, bp=Bp, ho=Ho,
        n_obs=args.encode_obs_size, n_act=args.encode_action_size,
        n_r1=args.hidden_size, co_width=meta.co_width,
        comm_other_w=comm_other_w, b_offs=meta.b_offs)

    operands = [cols, small,
                weights["w_conv"], weights["w_enc"], weights["w_s2"],
                weights["w_pv"], weights["w_out1"], weights["w_r2"],
                weights["b_all"]]

    in_specs = [pl.BlockSpec(op.shape, lambda i: (0, 0)) for op in operands]
    out_shape = (jax.ShapeDtypeStruct((Bp, out_rgbd_dim), jnp.float32),
                 jax.ShapeDtypeStruct((Bp, meta.co_width), jnp.float32))
    out_specs = (pl.BlockSpec((Bp, out_rgbd_dim), lambda i: (0, 0)),
                 pl.BlockSpec((Bp, meta.co_width), lambda i: (0, 0)))

    o_rgbd, o_co = pl.pallas_call(
        kern,
        grid=(1,),
        out_shape=out_shape,
        in_specs=in_specs,
        out_specs=out_specs,
        compiler_params=pltpu.CompilerParams(dimension_semantics=("arbitrary",)),
    )(*operands)

    pred_rgbd = o_rgbd[:B].reshape(B, 4, H, W)
    pred_comm = o_co[:B, :comm_flat].reshape(B, L, Cc)
    pred_other = o_co[:B, comm_flat:comm_flat + args.other_shape]
    return pred_rgbd, pred_comm, pred_other


# ----------------------------------------------------------------------------
# Pure-JAX f32 reference (same synthesized architecture) for a sanity check
# ----------------------------------------------------------------------------
def reference_forward(params, args, rgbd, comm, other, action):
    B = rgbd.shape[0]
    H, W = args.image_size * 4, args.image_size
    prelu = lambda y: jnp.where(y > 0, y, PRELU_ALPHA * y)

    cols = im2col_ref(rgbd)
    conv_c = params["conv_w"].shape[0]
    w_col = params["conv_w"].reshape(conv_c, -1).T
    conv = prelu(jnp.einsum("bpk,kc->bpc", cols, w_col) + params["conv_b"])
    x = conv.reshape(B, -1)                     # flatten order (ho, wo, c)

    enc_rgbd = prelu(x @ params["rgbd_lin"][0] + params["rgbd_lin"][1])
    enc_comm = prelu(comm.reshape(B, -1) @ params["comm_lin"][0] + params["comm_lin"][1])
    enc_other = prelu(other @ params["other_lin"][0] + params["other_lin"][1])
    obs = prelu(jnp.concatenate([enc_rgbd, enc_comm, enc_other], -1)
                @ params["obs_lin"][0] + params["obs_lin"][1])
    act = prelu(action @ params["action_lin"][0] + params["action_lin"][1])
    h = prelu(obs @ params["pvrnn_lin"][0] + params["pvrnn_lin"][1])
    hwa = jnp.concatenate([h, act], -1)
    r = prelu(hwa @ params["rgbd_out_1"][0] + params["rgbd_out_1"][1])
    pred_rgbd = (r @ params["rgbd_out_2"][0] + params["rgbd_out_2"][1]).reshape(B, 4, H, W)
    pred_comm = (hwa @ params["comm_out"][0] + params["comm_out"][1]).reshape(
        B, args.max_comm_len, args.comm_shape)
    pred_other = hwa @ params["other_out"][0] + params["other_out"][1]
    return pred_rgbd, pred_comm, pred_other


# ----------------------------------------------------------------------------
if __name__ == "__main__":
    args = SimpleNamespace(
        image_size=8,
        max_comm_len=8,
        comm_shape=8,
        other_shape=6,
        action_shape=4,
        encode_rgbd_size=32,
        encode_comm_size=16,
        encode_other_size=8,
        encode_obs_size=32,
        encode_action_size=16,
        pvrnn_mtrnn_size=32,
        hidden_size=64,
    )

    key = jax.random.PRNGKey(0)
    k_par, k_rgbd, k_comm, k_other, k_act = jax.random.split(key, 5)

    params = build_params(k_par, args)
    weights, meta = pack_params(params, args)

    B = 2
    rgbd = jax.random.normal(k_rgbd, (B, 4, args.image_size * 4, args.image_size), jnp.float32)
    comm = jax.random.normal(k_comm, (B, args.max_comm_len, args.comm_shape), jnp.float32)
    other = jax.random.normal(k_other, (B, args.other_shape), jnp.float32)
    action = jax.random.normal(k_act, (B, args.action_shape), jnp.float32)

    fwd = jax.jit(functools.partial(in_and_out_forward, meta=meta, args=args))
    pred_rgbd, pred_comm, pred_other = fwd(weights, rgbd, comm, other, action)
    jax.block_until_ready((pred_rgbd, pred_comm, pred_other))

    H, W = args.image_size * 4, args.image_size
    assert pred_rgbd.shape == (B, 4, H, W)
    assert pred_comm.shape == (B, args.max_comm_len, args.comm_shape)
    assert pred_other.shape == (B, args.other_shape)

    # Numerical sanity check vs. pure-JAX f32 reference (bf16 MXU tolerance).
    ref_rgbd, ref_comm, ref_other = reference_forward(params, args, rgbd, comm, other, action)
    err = max(float(jnp.max(jnp.abs(pred_rgbd - ref_rgbd))),
              float(jnp.max(jnp.abs(pred_comm - ref_comm))),
              float(jnp.max(jnp.abs(pred_other - ref_other))))
    assert err < 0.08, f"fused kernel mismatch vs reference: {err}"

    print("KERNEL_OK")
</pallas_src>

<mosaic_0001>
module attributes {stable_mosaic.version = 11 : i64} {
  func.func @_fused_kernel(%arg0: i32, %arg1: memref<128x144xbf16, #tpu.memory_space<vmem>>, %arg2: memref<8x80xf32, #tpu.memory_space<vmem>>, %arg3: memref<144x32xbf16, #tpu.memory_space<vmem>>, %arg4: memref<584x56xbf16, #tpu.memory_space<vmem>>, %arg5: memref<64x48xbf16, #tpu.memory_space<vmem>>, %arg6: memref<32x32xbf16, #tpu.memory_space<vmem>>, %arg7: memref<48x192xbf16, #tpu.memory_space<vmem>>, %arg8: memref<64x1024xbf16, #tpu.memory_space<vmem>>, %arg9: memref<1x1792xf32, #tpu.memory_space<vmem>>, %arg10: memref<8x1024xf32, #tpu.memory_space<vmem>>, %arg11: memref<8x128xf32, #tpu.memory_space<vmem>>) attributes {dimension_semantics = [#tpu.dimension_semantics<arbitrary>], iteration_bounds = array<i64: 1>, scalar_prefetch = 0 : i64, scratch_operands = 0 : i64, tpu.core_type = #tpu.core_type<tc>, window_params = [{pipeline_mode = #tpu.pipeline_mode<synchronous>, transform_indices = @transform_0, window_bounds = array<i64: 128, 144>}, {pipeline_mode = #tpu.pipeline_mode<synchronous>, transform_indices = @transform_1, window_bounds = array<i64: 8, 80>}, {pipeline_mode = #tpu.pipeline_mode<synchronous>, transform_indices = @transform_2, window_bounds = array<i64: 144, 32>}, {pipeline_mode = #tpu.pipeline_mode<synchronous>, transform_indices = @transform_3, window_bounds = array<i64: 584, 56>}, {pipeline_mode = #tpu.pipeline_mode<synchronous>, transform_indices = @transform_4, window_bounds = array<i64: 64, 48>}, {pipeline_mode = #tpu.pipeline_mode<synchronous>, transform_indices = @transform_5, window_bounds = array<i64: 32, 32>}, {pipeline_mode = #tpu.pipeline_mode<synchronous>, transform_indices = @transform_6, window_bounds = array<i64: 48, 192>}, {pipeline_mode = #tpu.pipeline_mode<synchronous>, transform_indices = @transform_7, window_bounds = array<i64: 64, 1024>}, {pipeline_mode = #tpu.pipeline_mode<synchronous>, transform_indices = @transform_8, window_bounds = array<i64: 1, 1792>}, {pipeline_mode = #tpu.pipeline_mode<synchronous>, transform_indices = @transform_9, window_bounds = array<i64: 8, 1024>}, {pipeline_mode = #tpu.pipeline_mode<synchronous>, transform_indices = @transform_10, window_bounds = array<i64: 8, 128>}]} {
    %c0 = arith.constant 0 : index
    %c0_0 = arith.constant 0 : index
    %0 = vector.load %arg1[%c0, %c0_0] : memref<128x144xbf16, #tpu.memory_space<vmem>>, vector<128x144xbf16>
    %c0_1 = arith.constant 0 : index
    %c0_2 = arith.constant 0 : index
    %1 = vector.load %arg3[%c0_1, %c0_2] : memref<144x32xbf16, #tpu.memory_space<vmem>>, vector<144x32xbf16>
    %cst = arith.constant dense<0.000000e+00> : vector<128x32xf32>
    %2 = tpu.matmul %0, %1, %cst {dimension_numbers = #tpu.dot_dimension_numbers<[1], [0], [0], [1], [0, 0, 1, 1], [], []>} : vector<128x144xbf16>, vector<144x32xbf16>, vector<128x32xf32> -> vector<128x32xf32>
    %c0_3 = arith.constant 0 : index
    %c0_4 = arith.constant 0 : index
    %3 = vector.load %arg9[%c0_3, %c0_4] : memref<1x1792xf32, #tpu.memory_space<vmem>>, vector<1x32xf32>
    %4 = vector.broadcast %3 : vector<1x32xf32> to vector<128x32xf32>
    %5 = arith.addf %2, %4 : vector<128x32xf32>
    %cst_5 = arith.constant 0.000000e+00 : f32
    %6 = vector.broadcast %cst_5 : f32 to vector<128x32xf32>
    %7 = arith.cmpf ogt, %5, %6 : vector<128x32xf32>
    %cst_6 = arith.constant 2.500000e-01 : f32
    %8 = vector.broadcast %cst_6 : f32 to vector<128x32xf32>
    %9 = arith.mulf %8, %5 : vector<128x32xf32>
    %10 = arith.select %7, %5, %9 : vector<128x32xi1>, vector<128x32xf32>
    %11 = vector.extract_strided_slice %10 {offsets = [0, 0], sizes = [8, 32], strides = [1, 1]} : vector<128x32xf32> to vector<8x32xf32>
    %12 = vector.extract_strided_slice %10 {offsets = [8, 0], sizes = [8, 32], strides = [1, 1]} : vector<128x32xf32> to vector<8x32xf32>
    %13 = vector.extract_strided_slice %10 {offsets = [16, 0], sizes = [8, 32], strides = [1, 1]} : vector<128x32xf32> to vector<8x32xf32>
    %14 = vector.extract_strided_slice %10 {offsets = [24, 0], sizes = [8, 32], strides = [1, 1]} : vector<128x32xf32> to vector<8x32xf32>
    %15 = vector.extract_strided_slice %10 {offsets = [32, 0], sizes = [8, 32], strides = [1, 1]} : vector<128x32xf32> to vector<8x32xf32>
    %16 = vector.extract_strided_slice %10 {offsets = [40, 0], sizes = [8, 32], strides = [1, 1]} : vector<128x32xf32> to vector<8x32xf32>
    %17 = vector.extract_strided_slice %10 {offsets = [48, 0], sizes = [8, 32], strides = [1, 1]} : vector<128x32xf32> to vector<8x32xf32>
    %18 = vector.extract_strided_slice %10 {offsets = [56, 0], sizes = [8, 32], strides = [1, 1]} : vector<128x32xf32> to vector<8x32xf32>
    %19 = vector.extract_strided_slice %10 {offsets = [64, 0], sizes = [8, 32], strides = [1, 1]} : vector<128x32xf32> to vector<8x32xf32>
    %20 = vector.extract_strided_slice %10 {offsets = [72, 0], sizes = [8, 32], strides = [1, 1]} : vector<128x32xf32> to vector<8x32xf32>
    %21 = vector.extract_strided_slice %10 {offsets = [80, 0], sizes = [8, 32], strides = [1, 1]} : vector<128x32xf32> to vector<8x32xf32>
    %22 = vector.extract_strided_slice %10 {offsets = [88, 0], sizes = [8, 32], strides = [1, 1]} : vector<128x32xf32> to vector<8x32xf32>
    %23 = vector.extract_strided_slice %10 {offsets = [96, 0], sizes = [8, 32], strides = [1, 1]} : vector<128x32xf32> to vector<8x32xf32>
    %24 = vector.extract_strided_slice %10 {offsets = [104, 0], sizes = [8, 32], strides = [1, 1]} : vector<128x32xf32> to vector<8x32xf32>
    %25 = vector.extract_strided_slice %10 {offsets = [112, 0], sizes = [8, 32], strides = [1, 1]} : vector<128x32xf32> to vector<8x32xf32>
    %26 = vector.extract_strided_slice %10 {offsets = [120, 0], sizes = [8, 32], strides = [1, 1]} : vector<128x32xf32> to vector<8x32xf32>
    %27 = tpu.concatenate %11, %12, %13, %14, %15, %16, %17, %18, %19, %20, %21, %22, %23, %24, %25, %26 in 1 : vector<8x32xf32>, vector<8x32xf32>, vector<8x32xf32>, vector<8x32xf32>, vector<8x32xf32>, vector<8x32xf32>, vector<8x32xf32>, vector<8x32xf32>, vector<8x32xf32>, vector<8x32xf32>, vector<8x32xf32>, vector<8x32xf32>, vector<8x32xf32>, vector<8x32xf32>, vector<8x32xf32>, vector<8x32xf32> -> vector<8x512xf32>
    %c0_7 = arith.constant 0 : index
    %c0_8 = arith.constant 0 : index
    %28 = vector.load %arg2[%c0_7, %c0_8] : memref<8x80xf32, #tpu.memory_space<vmem>>, vector<8x80xf32>
    %29 = vector.extract_strided_slice %28 {offsets = [0, 0], sizes = [8, 72], strides = [1, 1]} : vector<8x80xf32> to vector<8x72xf32>
    %30 = tpu.concatenate %27, %29 in 1 : vector<8x512xf32>, vector<8x72xf32> -> vector<8x584xf32>
    %31 = arith.truncf %30 : vector<8x584xf32> to vector<8x584xbf16>
    %c0_9 = arith.constant 0 : index
    %c0_10 = arith.constant 0 : index
    %32 = vector.load %arg4[%c0_9, %c0_10] : memref<584x56xbf16, #tpu.memory_space<vmem>>, vector<584x56xbf16>
    %cst_11 = arith.constant dense<0.000000e+00> : vector<8x56xf32>
    %33 = tpu.matmul %31, %32, %cst_11 {dimension_numbers = #tpu.dot_dimension_numbers<[1], [0], [0], [1], [0, 0, 1, 1], [], []>} : vector<8x584xbf16>, vector<584x56xbf16>, vector<8x56xf32> -> vector<8x56xf32>
    %c0_12 = arith.constant 0 : index
    %c128 = arith.constant 128 : index
    %34 = vector.load %arg9[%c0_12, %c128] : memref<1x1792xf32, #tpu.memory_space<vmem>>, vector<1x56xf32>
    %35 = vector.broadcast %34 : vector<1x56xf32> to vector<8x56xf32>
    %36 = arith.addf %33, %35 : vector<8x56xf32>
    %cst_13 = arith.constant 0.000000e+00 : f32
    %37 = vector.broadcast %cst_13 : f32 to vector<8x56xf32>
    %38 = arith.cmpf ogt, %36, %37 : vector<8x56xf32>
    %cst_14 = arith.constant 2.500000e-01 : f32
    %39 = vector.broadcast %cst_14 : f32 to vector<8x56xf32>
    %40 = arith.mulf %39, %36 : vector<8x56xf32>
    %41 = arith.select %38, %36, %40 : vector<8x56xi1>, vector<8x56xf32>
    %42 = vector.extract_strided_slice %28 {offsets = [0, 72], sizes = [8, 8], strides = [1, 1]} : vector<8x80xf32> to vector<8x8xf32>
    %43 = tpu.concatenate %41, %42 in 1 : vector<8x56xf32>, vector<8x8xf32> -> vector<8x64xf32>
    %44 = arith.truncf %43 : vector<8x64xf32> to vector<8x64xbf16>
    %c0_15 = arith.constant 0 : index
    %c0_16 = arith.constant 0 : index
    %45 = vector.load %arg5[%c0_15, %c0_16] : memref<64x48xbf16, #tpu.memory_space<vmem>>, vector<64x48xbf16>
    %cst_17 = arith.constant dense<0.000000e+00> : vector<8x48xf32>
    %46 = tpu.matmul %44, %45, %cst_17 {dimension_numbers = #tpu.dot_dimension_numbers<[1], [0], [0], [1], [0, 0, 1, 1], [], []>} : vector<8x64xbf16>, vector<64x48xbf16>, vector<8x48xf32> -> vector<8x48xf32>
    %c0_18 = arith.constant 0 : index
    %c256 = arith.constant 256 : index
    %47 = vector.load %arg9[%c0_18, %c256] : memref<1x1792xf32, #tpu.memory_space<vmem>>, vector<1x48xf32>
    %48 = vector.broadcast %47 : vector<1x48xf32> to vector<8x48xf32>
    %49 = arith.addf %46, %48 : vector<8x48xf32>
    %cst_19 = arith.constant 0.000000e+00 : f32
    %50 = vector.broadcast %cst_19 : f32 to vector<8x48xf32>
    %51 = arith.cmpf ogt, %49, %50 : vector<8x48xf32>
    %cst_20 = arith.constant 2.500000e-01 : f32
    %52 = vector.broadcast %cst_20 : f32 to vector<8x48xf32>
    %53 = arith.mulf %52, %49 : vector<8x48xf32>
    %54 = arith.select %51, %49, %53 : vector<8x48xi1>, vector<8x48xf32>
    %55 = vector.extract_strided_slice %54 {offsets = [0, 0], sizes = [8, 32], strides = [1, 1]} : vector<8x48xf32> to vector<8x32xf32>
    %56 = vector.extract_strided_slice %54 {offsets = [0, 32], sizes = [8, 16], strides = [1, 1]} : vector<8x48xf32> to vector<8x16xf32>
    %57 = arith.truncf %55 : vector<8x32xf32> to vector<8x32xbf16>
    %c0_21 = arith.constant 0 : index
    %c0_22 = arith.constant 0 : index
    %58 = vector.load %arg6[%c0_21, %c0_22] : memref<32x32xbf16, #tpu.memory_space<vmem>>, vector<32x32xbf16>
    %cst_23 = arith.constant dense<0.000000e+00> : vector<8x32xf32>
    %59 = tpu.matmul %57, %58, %cst_23 {dimension_numbers = #tpu.dot_dimension_numbers<[1], [0], [0], [1], [0, 0, 1, 1], [], []>} : vector<8x32xbf16>, vector<32x32xbf16>, vector<8x32xf32> -> vector<8x32xf32>
    %c0_24 = arith.constant 0 : index
    %c384 = arith.constant 384 : index
    %60 = vector.load %arg9[%c0_24, %c384] : memref<1x1792xf32, #tpu.memory_space<vmem>>, vector<1x32xf32>
    %61 = vector.broadcast %60 : vector<1x32xf32> to vector<8x32xf32>
    %62 = arith.addf %59, %61 : vector<8x32xf32>
    %cst_25 = arith.constant 0.000000e+00 : f32
    %63 = vector.broadcast %cst_25 : f32 to vector<8x32xf32>
    %64 = arith.cmpf ogt, %62, %63 : vector<8x32xf32>
    %cst_26 = arith.constant 2.500000e-01 : f32
    %65 = vector.broadcast %cst_26 : f32 to vector<8x32xf32>
    %66 = arith.mulf %65, %62 : vector<8x32xf32>
    %67 = arith.select %64, %62, %66 : vector<8x32xi1>, vector<8x32xf32>
    %68 = tpu.concatenate %67, %56 in 1 : vector<8x32xf32>, vector<8x16xf32> -> vector<8x48xf32>
    %69 = arith.truncf %68 : vector<8x48xf32> to vector<8x48xbf16>
    %c0_27 = arith.constant 0 : index
    %c0_28 = arith.constant 0 : index
    %70 = vector.load %arg7[%c0_27, %c0_28] : memref<48x192xbf16, #tpu.memory_space<vmem>>, vector<48x192xbf16>
    %cst_29 = arith.constant dense<0.000000e+00> : vector<8x192xf32>
    %71 = tpu.matmul %69, %70, %cst_29 {dimension_numbers = #tpu.dot_dimension_numbers<[1], [0], [0], [1], [0, 0, 1, 1], [], []>} : vector<8x48xbf16>, vector<48x192xbf16>, vector<8x192xf32> -> vector<8x192xf32>
    %c0_30 = arith.constant 0 : index
    %c512 = arith.constant 512 : index
    %72 = vector.load %arg9[%c0_30, %c512] : memref<1x1792xf32, #tpu.memory_space<vmem>>, vector<1x192xf32>
    %73 = vector.broadcast %72 : vector<1x192xf32> to vector<8x192xf32>
    %74 = arith.addf %71, %73 : vector<8x192xf32>
    %75 = vector.extract_strided_slice %74 {offsets = [0, 0], sizes = [8, 128], strides = [1, 1]} : vector<8x192xf32> to vector<8x128xf32>
    %c0_31 = arith.constant 0 : index
    %c0_32 = arith.constant 0 : index
    %76 = vector.load %arg11[%c0_31, %c0_32] : memref<8x128xf32, #tpu.memory_space<vmem>>, vector<8x128xf32>
    tpu.vector_store %arg11[%c0_31, %c0_32], %75 {strides = array<i32>} : memref<8x128xf32, #tpu.memory_space<vmem>>, vector<8x128xf32>,
    %77 = vector.extract_strided_slice %74 {offsets = [0, 128], sizes = [8, 64], strides = [1, 1]} : vector<8x192xf32> to vector<8x64xf32>
    %cst_33 = arith.constant 0.000000e+00 : f32
    %78 = vector.broadcast %cst_33 : f32 to vector<8x64xf32>
    %79 = arith.cmpf ogt, %77, %78 : vector<8x64xf32>
    %cst_34 = arith.constant 2.500000e-01 : f32
    %80 = vector.broadcast %cst_34 : f32 to vector<8x64xf32>
    %81 = arith.mulf %80, %77 : vector<8x64xf32>
    %82 = arith.select %79, %77, %81 : vector<8x64xi1>, vector<8x64xf32>
    %83 = arith.truncf %82 : vector<8x64xf32> to vector<8x64xbf16>
    %c0_35 = arith.constant 0 : index
    %c0_36 = arith.constant 0 : index
    %84 = vector.load %arg8[%c0_35, %c0_36] : memref<64x1024xbf16, #tpu.memory_space<vmem>>, vector<64x1024xbf16>
    %cst_37 = arith.constant dense<0.000000e+00> : vector<8x1024xf32>
    %85 = tpu.matmul %83, %84, %cst_37 {dimension_numbers = #tpu.dot_dimension_numbers<[1], [0], [0], [1], [0, 0, 1, 1], [], []>} : vector<8x64xbf16>, vector<64x1024xbf16>, vector<8x1024xf32> -> vector<8x1024xf32>
    %c0_38 = arith.constant 0 : index
    %c768 = arith.constant 768 : index
    %86 = vector.load %arg9[%c0_38, %c768] : memref<1x1792xf32, #tpu.memory_space<vmem>>, vector<1x1024xf32>
    %87 = vector.broadcast %86 : vector<1x1024xf32> to vector<8x1024xf32>
    %88 = arith.addf %85, %87 : vector<8x1024xf32>
    %c0_39 = arith.constant 0 : index
    %c0_40 = arith.constant 0 : index
    %89 = vector.load %arg10[%c0_39, %c0_40] : memref<8x1024xf32, #tpu.memory_space<vmem>>, vector<8x1024xf32>
    tpu.vector_store %arg10[%c0_39, %c0_40], %88 {strides = array<i32>} : memref<8x1024xf32, #tpu.memory_space<vmem>>, vector<8x1024xf32>,
    return
  }
  func.func @transform_0(%arg0: i32) -> (i32, i32) {
    %c0_i32 = arith.constant 0 : i32
    %c0_i32_0 = arith.constant 0 : i32
    %c0_i32_1 = arith.constant 0 : i32
    return %c0_i32, %c0_i32_0 : i32, i32
  }
  func.func @transform_1(%arg0: i32) -> (i32, i32) {
    %c0_i32 = arith.constant 0 : i32
    %c0_i32_0 = arith.constant 0 : i32
    %c0_i32_1 = arith.constant 0 : i32
    return %c0_i32, %c0_i32_0 : i32, i32
  }
  func.func @transform_2(%arg0: i32) -> (i32, i32) {
    %c0_i32 = arith.constant 0 : i32
    %c0_i32_0 = arith.constant 0 : i32
    %c0_i32_1 = arith.constant 0 : i32
    return %c0_i32, %c0_i32_0 : i32, i32
  }
  func.func @transform_3(%arg0: i32) -> (i32, i32) {
    %c0_i32 = arith.constant 0 : i32
    %c0_i32_0 = arith.constant 0 : i32
    %c0_i32_1 = arith.constant 0 : i32
    return %c0_i32, %c0_i32_0 : i32, i32
  }
  func.func @transform_4(%arg0: i32) -> (i32, i32) {
    %c0_i32 = arith.constant 0 : i32
    %c0_i32_0 = arith.constant 0 : i32
    %c0_i32_1 = arith.constant 0 : i32
    return %c0_i32, %c0_i32_0 : i32, i32
  }
  func.func @transform_5(%arg0: i32) -> (i32, i32) {
    %c0_i32 = arith.constant 0 : i32
    %c0_i32_0 = arith.constant 0 : i32
    %c0_i32_1 = arith.constant 0 : i32
    return %c0_i32, %c0_i32_0 : i32, i32
  }
  func.func @transform_6(%arg0: i32) -> (i32, i32) {
    %c0_i32 = arith.constant 0 : i32
    %c0_i32_0 = arith.constant 0 : i32
    %c0_i32_1 = arith.constant 0 : i32
    return %c0_i32, %c0_i32_0 : i32, i32
  }
  func.func @transform_7(%arg0: i32) -> (i32, i32) {
    %c0_i32 = arith.constant 0 : i32
    %c0_i32_0 = arith.constant 0 : i32
    %c0_i32_1 = arith.constant 0 : i32
    return %c0_i32, %c0_i32_0 : i32, i32
  }
  func.func @transform_8(%arg0: i32) -> (i32, i32) {
    %c0_i32 = arith.constant 0 : i32
    %c0_i32_0 = arith.constant 0 : i32
    %c0_i32_1 = arith.constant 0 : i32
    return %c0_i32, %c0_i32_0 : i32, i32
  }
  func.func @transform_9(%arg0: i32) -> (i32, i32) {
    %c0_i32 = arith.constant 0 : i32
    %c0_i32_0 = arith.constant 0 : i32
    %c0_i32_1 = arith.constant 0 : i32
    return %c0_i32, %c0_i32_0 : i32, i32
  }
  func.func @transform_10(%arg0: i32) -> (i32, i32) {
    %c0_i32 = arith.constant 0 : i32
    %c0_i32_0 = arith.constant 0 : i32
    %c0_i32_1 = arith.constant 0 : i32
    return %c0_i32, %c0_i32_0 : i32, i32
  }
}

</mosaic_0001>

<llo_original>
// kernel: in_and_out_forward.1
$region0: #{in_and_out_forward.1}
  #allocation0 [shape = 'u32[]', space=smem, size = 0x4, offset = 0x4, fixed_abs, tag = 'smem constant byte address 0x4 - core index']
  #allocation1 [shape = 'u32[144,128]{1,0:T(1,128)}', space=vmem, size = 0x12000, scoped, tag = 'internal scratch']
  %s0 = inlined_call_operand.vmem [shape: bf16[128,144], index: 0, kind: input, shape index: {}]
  %s1 = inlined_call_operand.vmem [shape: f32[8,80], index: 1, kind: input, shape index: {}]
  %s2 = inlined_call_operand.vmem [shape: bf16[144,32], index: 2, kind: input, shape index: {}]
  %s3 = inlined_call_operand.vmem [shape: bf16[584,56], index: 3, kind: input, shape index: {}]
  %s4 = inlined_call_operand.vmem [shape: bf16[64,48], index: 4, kind: input, shape index: {}]
  %s5 = inlined_call_operand.vmem [shape: bf16[32,32], index: 5, kind: input, shape index: {}]
  %s6 = inlined_call_operand.vmem [shape: bf16[48,192], index: 6, kind: input, shape index: {}]
  %s7 = inlined_call_operand.vmem [shape: bf16[64,1024], index: 7, kind: input, shape index: {}]
  %s8 = inlined_call_operand.vmem [shape: f32[1,1792], index: 8, kind: input, shape index: {}]
  %s9 = inlined_call_operand.vmem [shape: f32[8,1024], index: 9, kind: output, shape index: {0}]
  %s10 = inlined_call_operand.vmem [shape: f32[8,128], index: 10, kind: output, shape index: {1}]
  %11 = xla_tuple %s9, %s10
  %s12 = sld [smem:[#allocation0]]
  $region54: #{in_and_out_forward.1} parent=0
    _
  %s14 = ssub.s32 1, %s12
  %s15 = scalar_select 0, %s14, %s12
  // Predicated region
  $region2: #{in_and_out_forward.1} parent=0 // pred_check
    _
  $region3: #{in_and_out_forward.1} parent=0 // pred_check_branch
    %17 = sbr.rel (0) target = $region5
  $region4: #{in_and_out_forward.1} parent=0 // pred_region
    _
  $region5: #{in_and_out_forward.1} parent=0 // pred_fallthru
    _
  // Predicated region
  $region6: #{in_and_out_forward.1} parent=0 // pred_check
    _
  $region7: #{in_and_out_forward.1} parent=0 // pred_check_branch
    %19 = sbr.rel (0) target = $region9
  $region8: #{in_and_out_forward.1} parent=0 // pred_region
    _
  $region9: #{in_and_out_forward.1} parent=0 // pred_fallthru
    _
  // Predicated region
  $region10: #{in_and_out_forward.1} parent=0 // pred_check
    _
  $region11: #{in_and_out_forward.1} parent=0 // pred_check_branch
    %21 = sbr.rel (0) target = $region13
  $region12: #{in_and_out_forward.1} parent=0 // pred_region
    _
  $region13: #{in_and_out_forward.1} parent=0 // pred_fallthru
    _
  // Predicated region
  $region14: #{in_and_out_forward.1} parent=0 // pred_check
    _
  $region15: #{in_and_out_forward.1} parent=0 // pred_check_branch
    %23 = sbr.rel (0) target = $region17
  $region16: #{in_and_out_forward.1} parent=0 // pred_region
    _
  $region17: #{in_and_out_forward.1} parent=0 // pred_fallthru
    _
  // Predicated region
  $region18: #{in_and_out_forward.1} parent=0 // pred_check
    _
  $region19: #{in_and_out_forward.1} parent=0 // pred_check_branch
    %25 = sbr.rel (0) target = $region21
  $region20: #{in_and_out_forward.1} parent=0 // pred_region
    _
  $region21: #{in_and_out_forward.1} parent=0 // pred_fallthru
    _
  // Predicated region
  $region22: #{in_and_out_forward.1} parent=0 // pred_check
    _
  $region23: #{in_and_out_forward.1} parent=0 // pred_check_branch
    %27 = sbr.rel (0) target = $region25
  $region24: #{in_and_out_forward.1} parent=0 // pred_region
    _
  $region25: #{in_and_out_forward.1} parent=0 // pred_fallthru
    _
  // Predicated region
  $region26: #{in_and_out_forward.1} parent=0 // pred_check
    _
  $region27: #{in_and_out_forward.1} parent=0 // pred_check_branch
    %29 = sbr.rel (0) target = $region29
  $region28: #{in_and_out_forward.1} parent=0 // pred_region
    _
  $region29: #{in_and_out_forward.1} parent=0 // pred_fallthru
    _
  // Predicated region
  $region30: #{in_and_out_forward.1} parent=0 // pred_check
    _
  $region31: #{in_and_out_forward.1} parent=0 // pred_check_branch
    %31 = sbr.rel (0) target = $region33
  $region32: #{in_and_out_forward.1} parent=0 // pred_region
    _
  $region33: #{in_and_out_forward.1} parent=0 // pred_fallthru
    _
  // Predicated region
  $region34: #{in_and_out_forward.1} parent=0 // pred_check
    _
  $region35: #{in_and_out_forward.1} parent=0 // pred_check_branch
    %33 = sbr.rel (0) target = $region37
  $region36: #{in_and_out_forward.1} parent=0 // pred_region
    _
  $region37: #{in_and_out_forward.1} parent=0 // pred_fallthru
    _
  %v35 = vld [vmem:[%s0] sm:$0xff]
  %v36 = vld [vmem:[%s0 + $0x8] sm:$0xff]
  %v37 = vld [vmem:[%s0 + $0x10] sm:$0xff]
  %v38 = vld [vmem:[%s0 + $0x18] sm:$0xff]
  %v39 = vld [vmem:[%s0 + $0x20] sm:$0xff]
  %v40 = vld [vmem:[%s0 + $0x28] sm:$0xff]
  %v41 = vld [vmem:[%s0 + $0x30] sm:$0xff]
  %v42 = vld [vmem:[%s0 + $0x38] sm:$0xff]
  %v43 = vld [vmem:[%s0 + $0x40] sm:$0xff]
  %v44 = vld [vmem:[%s0 + $0x48] sm:$0xff]
  %v45 = vld [vmem:[%s0 + $0x50] sm:$0xff]
  %v46 = vld [vmem:[%s0 + $0x58] sm:$0xff]
  %v47 = vld [vmem:[%s0 + $0x60] sm:$0xff]
  %v48 = vld [vmem:[%s0 + $0x68] sm:$0xff]
  %v49 = vld [vmem:[%s0 + $0x70] sm:$0xff]
  %v50 = vld [vmem:[%s0 + $0x78] sm:$0xff]
  %v51 = vld [vmem:[%s2] sm:$0xf]
  %v52 = vld [vmem:[%s2 + $0x4] sm:$0xf]
  %v53 = vld [vmem:[%s2 + $0x8] sm:$0xf]
  %v54 = vld [vmem:[%s2 + $0xc] sm:$0xf]
  %v55 = vld [vmem:[%s2 + $0x10] sm:$0xf]
  %v56 = vld [vmem:[%s2 + $0x14] sm:$0xf]
  %v57 = vld [vmem:[%s2 + $0x18] sm:$0xf]
  %v58 = vld [vmem:[%s2 + $0x1c] sm:$0xf]
  %v59 = vld [vmem:[%s2 + $0x20] sm:$0xf]
  %v60 = vld [vmem:[%s2 + $0x24] sm:$0xf]
  %v61 = vld [vmem:[%s2 + $0x28] sm:$0xf]
  %v62 = vld [vmem:[%s2 + $0x2c] sm:$0xf]
  %v63 = vld [vmem:[%s2 + $0x30] sm:$0xf]
  %v64 = vld [vmem:[%s2 + $0x34] sm:$0xf]
  %v65 = vld [vmem:[%s2 + $0x38] sm:$0xf]
  %v66 = vld [vmem:[%s2 + $0x3c] sm:$0xf]
  %v67 = vld [vmem:[%s2 + $0x40] sm:$0xf]
  %v68 = vld [vmem:[%s2 + $0x44] sm:$0xf]
  %v69 = vld [vmem:[%s8] sm:$0x1]
  %v71 = vlaneseq
  %v72 = vshrl.u32 %v71, 7
  %v73 = vsub.s32 0, %v72
  %v74 = vrot.slane %v69, %v73
  %v92 = vunpack.c.l.b16 %v35
  %v93 = vunpack.c.h.b16 %v35
  %v94 = vunpack.c.l.b16 %v36
  %v95 = vunpack.c.h.b16 %v36
  %v96 = vunpack.c.l.b16 %v37
  %v97 = vunpack.c.h.b16 %v37
  %v98 = vunpack.c.l.b16 %v38
  %v99 = vunpack.c.h.b16 %v38
  %v100 = vunpack.c.l.b16 %v39
  %v101 = vunpack.c.h.b16 %v39
  %v102 = vunpack.c.l.b16 %v40
  %v103 = vunpack.c.h.b16 %v40
  %v104 = vunpack.c.l.b16 %v41
  %v105 = vunpack.c.h.b16 %v41
  %v106 = vunpack.c.l.b16 %v42
  %v107 = vunpack.c.h.b16 %v42
  %v108 = vunpack.c.l.b16 %v43
  %v109 = vunpack.c.h.b16 %v43
  %v110 = vunpack.c.l.b16 %v44
  %v111 = vunpack.c.h.b16 %v44
  %v112 = vunpack.c.l.b16 %v45
  %v113 = vunpack.c.h.b16 %v45
  %v114 = vunpack.c.l.b16 %v46
  %v115 = vunpack.c.h.b16 %v46
  %v116 = vunpack.c.l.b16 %v47
  %v117 = vunpack.c.h.b16 %v47
  %v118 = vunpack.c.l.b16 %v48
  %v119 = vunpack.c.h.b16 %v48
  %v120 = vunpack.c.l.b16 %v49
  %v121 = vunpack.c.h.b16 %v49
  %v122 = vunpack.c.l.b16 %v50
  %v123 = vunpack.c.h.b16 %v50
  %v124 = vpack.c.b16 %v94, %v92
  %v125 = vpack.c.b16 %v95, %v93
  %v126 = vpack.c.b16 %v98, %v96
  %v127 = vpack.c.b16 %v99, %v97
  %v128 = vpack.c.b16 %v102, %v100
  %v129 = vpack.c.b16 %v103, %v101
  %v130 = vpack.c.b16 %v106, %v104
  %v131 = vpack.c.b16 %v107, %v105
  %v132 = vpack.c.b16 %v110, %v108
  %v133 = vpack.c.b16 %v111, %v109
  %v134 = vpack.c.b16 %v114, %v112
  %v135 = vpack.c.b16 %v115, %v113
  %v136 = vpack.c.b16 %v118, %v116
  %v137 = vpack.c.b16 %v119, %v117
  %v138 = vpack.c.b16 %v122, %v120
  %v139 = vpack.c.b16 %v123, %v121
  %v166 = vunpack.c.l.b16 %v51
  %v167 = vunpack.c.l.b16 %v52
  %v168 = vunpack.c.l.b16 %v53
  %v169 = vunpack.c.l.b16 %v54
  %v170 = vunpack.c.l.b16 %v55
  %v171 = vunpack.c.l.b16 %v56
  %v172 = vunpack.c.l.b16 %v57
  %v173 = vunpack.c.l.b16 %v58
  %v174 = vunpack.c.l.b16 %v59
  %v175 = vunpack.c.l.b16 %v60
  %v176 = vunpack.c.l.b16 %v61
  %v177 = vunpack.c.l.b16 %v62
  %v178 = vunpack.c.l.b16 %v63
  %v179 = vunpack.c.l.b16 %v64
  %v180 = vunpack.c.l.b16 %v65
  %v181 = vunpack.c.l.b16 %v66
  %v182 = vunpack.c.l.b16 %v67
  %v183 = vunpack.c.l.b16 %v68
  %v184 = vpack.c.b16 %v167, %v166
  %v185 = vpack.c.b16 %v169, %v168
  %v186 = vpack.c.b16 %v171, %v170
  %v187 = vpack.c.b16 %v173, %v172
  %v188 = vpack.c.b16 %v175, %v174
  %v189 = vpack.c.b16 %v177, %v176
  %v190 = vpack.c.b16 %v179, %v178
  %v191 = vpack.c.b16 %v181, %v180
  %v192 = vpack.c.b16 %v183, %v182
  %vm202 = vcmask 130048
  %v204 = vsel %vm202, %v125, 0
  %v207 = vsel %vm202, %v127, 0
  %v210 = vsel %vm202, %v129, 0
  %v213 = vsel %vm202, %v131, 0
  %v216 = vsel %vm202, %v133, 0
  %v219 = vsel %vm202, %v135, 0
  %v222 = vsel %vm202, %v137, 0
  %v225 = vsel %vm202, %v139, 0
  %227 = vmatprep.subr.bf16.mxu0 0
  %228 = vmatpush1.bf16.msra.mxu0 %v184
  %229 = vmatprep.subr.bf16.mxu0 0
  %230 = vmatpush1.bf16.msra.mxu0 %v185
  %231 = vmatprep.subr.bf16.mxu0 0
  %232 = vmatpush1.bf16.msra.mxu0 %v186
  %233 = vmatprep.subr.bf16.mxu0 0
  %234 = vmatpush1.bf16.msra.mxu0 %v187
  %235 = vmatprep.subr.bf16.mxu0 0
  %236 = vmatpush1.bf16.msra.mxu0 %v188
  %237 = vmatprep.subr.bf16.mxu0 0
  %238 = vmatpush1.bf16.msra.mxu0 %v189
  %239 = vmatprep.subr.bf16.mxu0 0
  %240 = vmatpush1.bf16.msra.mxu0 %v190
  %241 = vmatprep.subr.bf16.mxu0 0
  %242 = vmatpush1.bf16.msra.mxu0 %v191
  %243 = vmatprep.subr.bf16.mxu0 0
  %244 = vmatpush1.bf16.msra.mxu0 %v192
  %245 = vmatprep.subr.bf16.mxu0 0
  %246 = vmatpush1.bf16.msra.mxu0 0
  %247 = vmatprep.subr.bf16.mxu0 0
  %248 = vmatpush1.bf16.msra.mxu0 0
  %249 = vmatprep.subr.bf16.mxu0 0
  %250 = vmatpush1.bf16.msra.mxu0 0
  %251 = vmatprep.subr.bf16.mxu0 0
  %252 = vmatpush1.bf16.msra.mxu0 0
  %253 = vmatprep.subr.bf16.mxu0 0
  %254 = vmatpush1.bf16.msra.mxu0 0
  %255 = vmatprep.subr.bf16.mxu0 0
  %256 = vmatpush1.bf16.msra.mxu0 0
  %257 = vmatprep.subr.bf16.mxu0 0
  %258 = vmatpush1.bf16.msra.mxu0 0
  %259 = vmatprep.mubr.bf16.mxu0 %v204
  %260 = vmatmul.mubr.bf16.gmra.mrb[0].mxu0 %v124
  %v261 = vpop.f32.mrb[0].mxu0
  %v262 = vadd.f32 %v74, %v261
  %v263 = vpop.f32.mrb[0].mxu0
  %v264 = vpop.f32.mrb[0].mxu0
  %v265 = vadd.f32 %v74, %v264
  %v266 = vpop.f32.mrb[0].mxu0
  %267 = vmatprep.mubr.bf16.mxu0 %v207
  %268 = vmatmul.mubr.bf16.gmra.mrb[0].mxu0 %v126
  %v269 = vpop.f32.mrb[0].mxu0
  %v270 = vadd.f32 %v74, %v269
  %v271 = vpop.f32.mrb[0].mxu0
  %v272 = vpop.f32.mrb[0].mxu0
  %v273 = vadd.f32 %v74, %v272
  %v274 = vpop.f32.mrb[0].mxu0
  %275 = vmatprep.mubr.bf16.mxu0 %v210
  %276 = vmatmul.mubr.bf16.gmra.mrb[0].mxu0 %v128
  %v277 = vpop.f32.mrb[0].mxu0
  %v278 = vadd.f32 %v74, %v277
  %v279 = vpop.f32.mrb[0].mxu0
  %v280 = vpop.f32.mrb[0].mxu0
  %v281 = vadd.f32 %v74, %v280
  %v282 = vpop.f32.mrb[0].mxu0
  %283 = vmatprep.mubr.bf16.mxu0 %v213
  %284 = vmatmul.mubr.bf16.gmra.mrb[0].mxu0 %v130
  %v285 = vpop.f32.mrb[0].mxu0
  %v286 = vadd.f32 %v74, %v285
  %v287 = vpop.f32.mrb[0].mxu0
  %v288 = vpop.f32.mrb[0].mxu0
  %v289 = vadd.f32 %v74, %v288
  %v290 = vpop.f32.mrb[0].mxu0
  %291 = vmatprep.mubr.bf16.mxu0 %v216
  %292 = vmatmul.mubr.bf16.gmra.mrb[0].mxu0 %v132
  %v293 = vpop.f32.mrb[0].mxu0
  %v294 = vadd.f32 %v74, %v293
  %v295 = vpop.f32.mrb[0].mxu0
  %v296 = vpop.f32.mrb[0].mxu0
  %v297 = vadd.f32 %v74, %v296
  %v298 = vpop.f32.mrb[0].mxu0
  %299 = vmatprep.mubr.bf16.mxu0 %v219
  %300 = vmatmul.mubr.bf16.gmra.mrb[0].mxu0 %v134
  %v301 = vpop.f32.mrb[0].mxu0
  %v302 = vadd.f32 %v74, %v301
  %v303 = vpop.f32.mrb[0].mxu0
  %v304 = vpop.f32.mrb[0].mxu0
  %v305 = vadd.f32 %v74, %v304
  %v306 = vpop.f32.mrb[0].mxu0
  %307 = vmatprep.mubr.bf16.mxu0 %v222
  %308 = vmatmul.mubr.bf16.gmra.mrb[0].mxu0 %v136
  %v309 = vpop.f32.mrb[0].mxu0
  %v310 = vadd.f32 %v74, %v309
  %v311 = vpop.f32.mrb[0].mxu0
  %v312 = vpop.f32.mrb[0].mxu0
  %v313 = vadd.f32 %v74, %v312
  %v314 = vpop.f32.mrb[0].mxu0
  %315 = vmatprep.mubr.bf16.mxu0 %v225
  %316 = vmatmul.mubr.bf16.gmra.mrb[0].mxu0 %v138
  %v317 = vpop.f32.mrb[0].mxu0
  %v318 = vadd.f32 %v74, %v317
  %v319 = vpop.f32.mrb[0].mxu0
  %v320 = vpop.f32.mrb[0].mxu0
  %v321 = vadd.f32 %v74, %v320
  %v322 = vpop.f32.mrb[0].mxu0
  %323 = vdwg.mxu0
  %vm324 = vcmp.gt.f32.partialorder %v262, 0.0
  %vm325 = vcmp.gt.f32.partialorder %v265, 0.0
  %vm326 = vcmp.gt.f32.partialorder %v270, 0.0
  %vm327 = vcmp.gt.f32.partialorder %v273, 0.0
  %vm328 = vcmp.gt.f32.partialorder %v278, 0.0
  %vm329 = vcmp.gt.f32.partialorder %v281, 0.0
  %vm330 = vcmp.gt.f32.partialorder %v286, 0.0
  %vm331 = vcmp.gt.f32.partialorder %v289, 0.0
  %vm332 = vcmp.gt.f32.partialorder %v294, 0.0
  %vm333 = vcmp.gt.f32.partialorder %v297, 0.0
  %vm334 = vcmp.gt.f32.partialorder %v302, 0.0
  %vm335 = vcmp.gt.f32.partialorder %v305, 0.0
  %vm336 = vcmp.gt.f32.partialorder %v310, 0.0
  %vm337 = vcmp.gt.f32.partialorder %v313, 0.0
  %vm338 = vcmp.gt.f32.partialorder %v318, 0.0
  %vm339 = vcmp.gt.f32.partialorder %v321, 0.0
  %v340 = vmul.f32 %v262, 0.25
  %v341 = vmul.f32 %v265, 0.25
  %v342 = vmul.f32 %v270, 0.25
  %v343 = vmul.f32 %v273, 0.25
  %v344 = vmul.f32 %v278, 0.25
  %v345 = vmul.f32 %v281, 0.25
  %v346 = vmul.f32 %v286, 0.25
  %v347 = vmul.f32 %v289, 0.25
  %v348 = vmul.f32 %v294, 0.25
  %v349 = vmul.f32 %v297, 0.25
  %v350 = vmul.f32 %v302, 0.25
  %v351 = vmul.f32 %v305, 0.25
  %v352 = vmul.f32 %v310, 0.25
  %v353 = vmul.f32 %v313, 0.25
  %v354 = vmul.f32 %v318, 0.25
  %v355 = vmul.f32 %v321, 0.25
  %v356 = vsel %vm324, %v262, %v340
  %v357 = vsel %vm325, %v265, %v341
  %v358 = vsel %vm326, %v270, %v342
  %v359 = vsel %vm327, %v273, %v343
  %v360 = vsel %vm328, %v278, %v344
  %v361 = vsel %vm329, %v281, %v345
  %v362 = vsel %vm330, %v286, %v346
  %v363 = vsel %vm331, %v289, %v347
  %v364 = vsel %vm332, %v294, %v348
  %v365 = vsel %vm333, %v297, %v349
  %v366 = vsel %vm334, %v302, %v350
  %v367 = vsel %vm335, %v305, %v351
  %v368 = vsel %vm336, %v310, %v352
  %v369 = vsel %vm337, %v313, %v353
  %v370 = vsel %vm338, %v318, %v354
  %v371 = vsel %vm339, %v321, %v355
  %373 = vrot.lane.b32.xlu0 %v357, 32
  %v374 = vpop.permute.xlu0 %373
  %377 = vrot.lane.b32.xlu0 %v358, 64
  %v378 = vpop.permute.xlu0 %377
  %381 = vrot.lane.b32.xlu0 %v359, 96
  %v382 = vpop.permute.xlu0 %381
  %385 = vrot.lane.b32.xlu0 %v361, 32
  %v386 = vpop.permute.xlu0 %385
  %389 = vrot.lane.b32.xlu0 %v362, 64
  %v390 = vpop.permute.xlu0 %389
  %393 = vrot.lane.b32.xlu0 %v363, 96
  %v394 = vpop.permute.xlu0 %393
  %397 = vrot.lane.b32.xlu0 %v365, 32
  %v398 = vpop.permute.xlu0 %397
  %401 = vrot.lane.b32.xlu0 %v366, 64
  %v402 = vpop.permute.xlu0 %401
  %405 = vrot.lane.b32.xlu0 %v367, 96
  %v406 = vpop.permute.xlu0 %405
  %409 = vrot.lane.b32.xlu0 %v369, 32
  %v410 = vpop.permute.xlu0 %409
  %413 = vrot.lane.b32.xlu0 %v370, 64
  %v414 = vpop.permute.xlu0 %413
  %417 = vrot.lane.b32.xlu0 %v371, 96
  %v418 = vpop.permute.xlu0 %417
  %vm420 = vcmask 261120
  %v421 = vsel %vm420, %v356, %v374
  %vm422 = vcmask 523264
  %v423 = vsel %vm422, %v421, %v378
  %vm424 = vcmask 785408
  %v425 = vsel %vm424, %v423, %v382
  %v426 = vsel %vm420, %v360, %v386
  %v427 = vsel %vm422, %v426, %v390
  %v428 = vsel %vm424, %v427, %v394
  %v429 = vsel %vm420, %v364, %v398
  %v430 = vsel %vm422, %v429, %v402
  %v431 = vsel %vm424, %v430, %v406
  %v432 = vsel %vm420, %v368, %v410
  %v433 = vsel %vm422, %v432, %v414
  %v434 = vsel %vm424, %v433, %v418
  %v435 = vld [vmem:[%s1] sm:$0xff]
  %v436 = vpack.c.bf16 %v425, %v425
  %v437 = vpack.c.bf16 %v428, %v428
  %v438 = vpack.c.bf16 %v431, %v431
  %v439 = vpack.c.bf16 %v434, %v434
  %v440 = vpack.c.bf16 %v435, %v435
  %v441 = vld [vmem:[%s3] sm:$0xf]
  %v442 = vld [vmem:[%s3 + $0x4] sm:$0xf]
  %v443 = vld [vmem:[%s3 + $0x8] sm:$0xf]
  %v444 = vld [vmem:[%s3 + $0xc] sm:$0xf]
  %v445 = vld [vmem:[%s3 + $0x10] sm:$0xf]
  %v446 = vld [vmem:[%s3 + $0x14] sm:$0xf]
  %v447 = vld [vmem:[%s3 + $0x18] sm:$0xf]
  %v448 = vld [vmem:[%s3 + $0x1c] sm:$0xf]
  %v449 = vld [vmem:[%s3 + $0x20] sm:$0xf]
  %v450 = vld [vmem:[%s3 + $0x24] sm:$0xf]
  %v451 = vld [vmem:[%s3 + $0x28] sm:$0xf]
  %v452 = vld [vmem:[%s3 + $0x2c] sm:$0xf]
  %v453 = vld [vmem:[%s3 + $0x30] sm:$0xf]
  %v454 = vld [vmem:[%s3 + $0x34] sm:$0xf]
  %v455 = vld [vmem:[%s3 + $0x38] sm:$0xf]
  %v456 = vld [vmem:[%s3 + $0x3c] sm:$0xf]
  %v457 = vld [vmem:[%s3 + $0x40] sm:$0xf]
  %v458 = vld [vmem:[%s3 + $0x44] sm:$0xf]
  %v459 = vld [vmem:[%s3 + $0x48] sm:$0xf]
  %v460 = vld [vmem:[%s3 + $0x4c] sm:$0xf]
  %v461 = vld [vmem:[%s3 + $0x50] sm:$0xf]
  %v462 = vld [vmem:[%s3 + $0x54] sm:$0xf]
  %v463 = vld [vmem:[%s3 + $0x58] sm:$0xf]
  %v464 = vld [vmem:[%s3 + $0x5c] sm:$0xf]
  %v465 = vld [vmem:[%s3 + $0x60] sm:$0xf]
  %v466 = vld [vmem:[%s3 + $0x64] sm:$0xf]
  %v467 = vld [vmem:[%s3 + $0x68] sm:$0xf]
  %v468 = vld [vmem:[%s3 + $0x6c] sm:$0xf]
  %v469 = vld [vmem:[%s3 + $0x70] sm:$0xf]
  %v470 = vld [vmem:[%s3 + $0x74] sm:$0xf]
  %v471 = vld [vmem:[%s3 + $0x78] sm:$0xf]
  %v472 = vld [vmem:[%s3 + $0x7c] sm:$0xf]
  %v473 = vld [vmem:[%s3 + $0x80] sm:$0xf]
  %v474 = vld [vmem:[%s3 + $0x84] sm:$0xf]
  %v475 = vld [vmem:[%s3 + $0x88] sm:$0xf]
  %v476 = vld [vmem:[%s3 + $0x8c] sm:$0xf]
  %v477 = vld [vmem:[%s3 + $0x90] sm:$0xf]
  %v478 = vld [vmem:[%s3 + $0x94] sm:$0xf]
  %v479 = vld [vmem:[%s3 + $0x98] sm:$0xf]
  %v480 = vld [vmem:[%s3 + $0x9c] sm:$0xf]
  %v481 = vld [vmem:[%s3 + $0xa0] sm:$0xf]
  %v482 = vld [vmem:[%s3 + $0xa4] sm:$0xf]
  %v483 = vld [vmem:[%s3 + $0xa8] sm:$0xf]
  %v484 = vld [vmem:[%s3 + $0xac] sm:$0xf]
  %v485 = vld [vmem:[%s3 + $0xb0] sm:$0xf]
  %v486 = vld [vmem:[%s3 + $0xb4] sm:$0xf]
  %v487 = vld [vmem:[%s3 + $0xb8] sm:$0xf]
  %v488 = vld [vmem:[%s3 + $0xbc] sm:$0xf]
  %v489 = vld [vmem:[%s3 + $0xc0] sm:$0xf]
  %v490 = vld [vmem:[%s3 + $0xc4] sm:$0xf]
  %v491 = vld [vmem:[%s3 + $0xc8] sm:$0xf]
  %v492 = vld [vmem:[%s3 + $0xcc] sm:$0xf]
  %v493 = vld [vmem:[%s3 + $0xd0] sm:$0xf]
  %v494 = vld [vmem:[%s3 + $0xd4] sm:$0xf]
  %v495 = vld [vmem:[%s3 + $0xd8] sm:$0xf]
  %v496 = vld [vmem:[%s3 + $0xdc] sm:$0xf]
  %v497 = vld [vmem:[%s3 + $0xe0] sm:$0xf]
  %v498 = vld [vmem:[%s3 + $0xe4] sm:$0xf]
  %v499 = vld [vmem:[%s3 + $0xe8] sm:$0xf]
  %v500 = vld [vmem:[%s3 + $0xec] sm:$0xf]
  %v501 = vld [vmem:[%s3 + $0xf0] sm:$0xf]
  %v502 = vld [vmem:[%s3 + $0xf4] sm:$0xf]
  %v503 = vld [vmem:[%s3 + $0xf8] sm:$0xf]
  %v504 = vld [vmem:[%s3 + $0xfc] sm:$0xf]
  %v505 = vld [vmem:[%s3 + $0x100] sm:$0xf]
  %v506 = vld [vmem:[%s3 + $0x104] sm:$0xf]
  %v507 = vld [vmem:[%s3 + $0x108] sm:$0xf]
  %v508 = vld [vmem:[%s3 + $0x10c] sm:$0xf]
  %v509 = vld [vmem:[%s3 + $0x110] sm:$0xf]
  %v510 = vld [vmem:[%s3 + $0x114] sm:$0xf]
  %v511 = vld [vmem:[%s3 + $0x118] sm:$0xf]
  %v512 = vld [vmem:[%s3 + $0x11c] sm:$0xf]
  %v513 = vld [vmem:[%s3 + $0x120] sm:$0xf]
  %v514 = vld [vmem:[%s8 + $0x1] sm:$0x1]
  %v516 = vlaneseq
  %v517 = vshrl.u32 %v516, 7
  %v518 = vsub.s32 0, %v517
  %v519 = vrot.slane %v514, %v518
  %v594 = vunpack.c.l.b16 %v441
  %v595 = vunpack.c.l.b16 %v442
  %v596 = vunpack.c.l.b16 %v443
  %v597 = vunpack.c.l.b16 %v444
  %v598 = vunpack.c.l.b16 %v445
  %v599 = vunpack.c.l.b16 %v446
  %v600 = vunpack.c.l.b16 %v447
  %v601 = vunpack.c.l.b16 %v448
  %v602 = vunpack.c.l.b16 %v449
  %v603 = vunpack.c.l.b16 %v450
  %v604 = vunpack.c.l.b16 %v451
  %v605 = vunpack.c.l.b16 %v452
  %v606 = vunpack.c.l.b16 %v453
  %v607 = vunpack.c.l.b16 %v454
  %v608 = vunpack.c.l.b16 %v455
  %v609 = vunpack.c.l.b16 %v456
  %v610 = vunpack.c.l.b16 %v457
  %v611 = vunpack.c.l.b16 %v458
  %v612 = vunpack.c.l.b16 %v459
  %v613 = vunpack.c.l.b16 %v460
  %v614 = vunpack.c.l.b16 %v461
  %v615 = vunpack.c.l.b16 %v462
  %v616 = vunpack.c.l.b16 %v463
  %v617 = vunpack.c.l.b16 %v464
  %v618 = vunpack.c.l.b16 %v465
  %v619 = vunpack.c.l.b16 %v466
  %v620 = vunpack.c.l.b16 %v467
  %v621 = vunpack.c.l.b16 %v468
  %v622 = vunpack.c.l.b16 %v469
  %v623 = vunpack.c.l.b16 %v470
  %v624 = vunpack.c.l.b16 %v471
  %v625 = vunpack.c.l.b16 %v472
  %v626 = vunpack.c.l.b16 %v473
  %v627 = vunpack.c.l.b16 %v474
  %v628 = vunpack.c.l.b16 %v475
  %v629 = vunpack.c.l.b16 %v476
  %v630 = vunpack.c.l.b16 %v477
  %v631 = vunpack.c.l.b16 %v478
  %v632 = vunpack.c.l.b16 %v479
  %v633 = vunpack.c.l.b16 %v480
  %v634 = vunpack.c.l.b16 %v481
  %v635 = vunpack.c.l.b16 %v482
  %v636 = vunpack.c.l.b16 %v483
  %v637 = vunpack.c.l.b16 %v484
  %v638 = vunpack.c.l.b16 %v485
  %v639 = vunpack.c.l.b16 %v486
  %v640 = vunpack.c.l.b16 %v487
  %v641 = vunpack.c.l.b16 %v488
  %v642 = vunpack.c.l.b16 %v489
  %v643 = vunpack.c.l.b16 %v490
  %v644 = vunpack.c.l.b16 %v491
  %v645 = vunpack.c.l.b16 %v492
  %v646 = vunpack.c.l.b16 %v493
  %v647 = vunpack.c.l.b16 %v494
  %v648 = vunpack.c.l.b16 %v495
  %v649 = vunpack.c.l.b16 %v496
  %v650 = vunpack.c.l.b16 %v497
  %v651 = vunpack.c.l.b16 %v498
  %v652 = vunpack.c.l.b16 %v499
  %v653 = vunpack.c.l.b16 %v500
  %v654 = vunpack.c.l.b16 %v501
  %v655 = vunpack.c.l.b16 %v502
  %v656 = vunpack.c.l.b16 %v503
  %v657 = vunpack.c.l.b16 %v504
  %v658 = vunpack.c.l.b16 %v505
  %v659 = vunpack.c.l.b16 %v506
  %v660 = vunpack.c.l.b16 %v507
  %v661 = vunpack.c.l.b16 %v508
  %v662 = vunpack.c.l.b16 %v509
  %v663 = vunpack.c.l.b16 %v510
  %v664 = vunpack.c.l.b16 %v511
  %v665 = vunpack.c.l.b16 %v512
  %v666 = vunpack.c.l.b16 %v513
  %v667 = vpack.c.b16 %v595, %v594
  %v668 = vpack.c.b16 %v597, %v596
  %v669 = vpack.c.b16 %v599, %v598
  %v670 = vpack.c.b16 %v601, %v600
  %v671 = vpack.c.b16 %v603, %v602
  %v672 = vpack.c.b16 %v605, %v604
  %v673 = vpack.c.b16 %v607, %v606
  %v674 = vpack.c.b16 %v609, %v608
  %v675 = vpack.c.b16 %v611, %v610
  %v676 = vpack.c.b16 %v613, %v612
  %v677 = vpack.c.b16 %v615, %v614
  %v678 = vpack.c.b16 %v617, %v616
  %v679 = vpack.c.b16 %v619, %v618
  %v680 = vpack.c.b16 %v621, %v620
  %v681 = vpack.c.b16 %v623, %v622
  %v682 = vpack.c.b16 %v625, %v624
  %v683 = vpack.c.b16 %v627, %v626
  %v684 = vpack.c.b16 %v629, %v628
  %v685 = vpack.c.b16 %v631, %v630
  %v686 = vpack.c.b16 %v633, %v632
  %v687 = vpack.c.b16 %v635, %v634
  %v688 = vpack.c.b16 %v637, %v636
  %v689 = vpack.c.b16 %v639, %v638
  %v690 = vpack.c.b16 %v641, %v640
  %v691 = vpack.c.b16 %v643, %v642
  %v692 = vpack.c.b16 %v645, %v644
  %v693 = vpack.c.b16 %v647, %v646
  %v694 = vpack.c.b16 %v649, %v648
  %v695 = vpack.c.b16 %v651, %v650
  %v696 = vpack.c.b16 %v653, %v652
  %v697 = vpack.c.b16 %v655, %v654
  %v698 = vpack.c.b16 %v657, %v656
  %v699 = vpack.c.b16 %v659, %v658
  %v700 = vpack.c.b16 %v661, %v660
  %v701 = vpack.c.b16 %v663, %v662
  %v702 = vpack.c.b16 %v665, %v664
  %v703 = vpack.c.b16 %v666, %v666
  %vm740 = vcmask 588800
  %v742 = vsel %vm740, %v440, 0
  %vm744 = vcmask 1043456
  %v746 = vsel %vm744, %v703, 0
  %748 = vmatprep.subr.bf16.mxu0 0
  %749 = vmatpush1.bf16.msra.mxu0 %v667
  %750 = vmatprep.subr.bf16.mxu0 0
  %751 = vmatpush1.bf16.msra.mxu0 %v668
  %752 = vmatprep.subr.bf16.mxu0 0
  %753 = vmatpush1.bf16.msra.mxu0 %v669
  %754 = vmatprep.subr.bf16.mxu0 0
  %755 = vmatpush1.bf16.msra.mxu0 %v670
  %756 = vmatprep.subr.bf16.mxu0 0
  %757 = vmatpush1.bf16.msra.mxu0 %v671
  %758 = vmatprep.subr.bf16.mxu0 0
  %759 = vmatpush1.bf16.msra.mxu0 %v672
  %760 = vmatprep.subr.bf16.mxu0 0
  %761 = vmatpush1.bf16.msra.mxu0 %v673
  %762 = vmatprep.subr.bf16.mxu0 0
  %763 = vmatpush1.bf16.msra.mxu0 %v674
  %764 = vmatprep.subr.bf16.mxu0 0
  %765 = vmatpush1.bf16.msra.mxu0 %v675
  %766 = vmatprep.subr.bf16.mxu0 0
  %767 = vmatpush1.bf16.msra.mxu0 %v676
  %768 = vmatprep.subr.bf16.mxu0 0
  %769 = vmatpush1.bf16.msra.mxu0 %v677
  %770 = vmatprep.subr.bf16.mxu0 0
  %771 = vmatpush1.bf16.msra.mxu0 %v678
  %772 = vmatprep.subr.bf16.mxu0 0
  %773 = vmatpush1.bf16.msra.mxu0 %v679
  %774 = vmatprep.subr.bf16.mxu0 0
  %775 = vmatpush1.bf16.msra.mxu0 %v680
  %776 = vmatprep.subr.bf16.mxu0 0
  %777 = vmatpush1.bf16.msra.mxu0 %v681
  %778 = vmatprep.subr.bf16.mxu0 0
  %779 = vmatpush1.bf16.msra.mxu0 %v682
  %780 = vmatprep.mubr.bf16.mxu0 %v437
  %781 = vmatmul.mubr.bf16.gmra.mrb[0].mxu0 %v436
  %v782 = vpop.f32.mrb[0].mxu0
  %v783 = vadd.f32 %v519, %v782
  %v784 = vpop.f32.mrb[0].mxu0
  %v785 = vpop.f32.mrb[0].mxu0
  %v786 = vpop.f32.mrb[0].mxu0
  %787 = vdwg.mxu0
  %788 = vmatprep.subr.bf16.mxu0 0
  %789 = vmatpush1.bf16.msra.mxu0 %v683
  %790 = vmatprep.subr.bf16.mxu0 0
  %791 = vmatpush1.bf16.msra.mxu0 %v684
  %792 = vmatprep.subr.bf16.mxu0 0
  %793 = vmatpush1.bf16.msra.mxu0 %v685
  %794 = vmatprep.subr.bf16.mxu0 0
  %795 = vmatpush1.bf16.msra.mxu0 %v686
  %796 = vmatprep.subr.bf16.mxu0 0
  %797 = vmatpush1.bf16.msra.mxu0 %v687
  %798 = vmatprep.subr.bf16.mxu0 0
  %799 = vmatpush1.bf16.msra.mxu0 %v688
  %800 = vmatprep.subr.bf16.mxu0 0
  %801 = vmatpush1.bf16.msra.mxu0 %v689
  %802 = vmatprep.subr.bf16.mxu0 0
  %803 = vmatpush1.bf16.msra.mxu0 %v690
  %804 = vmatprep.subr.bf16.mxu0 0
  %805 = vmatpush1.bf16.msra.mxu0 %v691
  %806 = vmatprep.subr.bf16.mxu0 0
  %807 = vmatpush1.bf16.msra.mxu0 %v692
  %808 = vmatprep.subr.bf16.mxu0 0
  %809 = vmatpush1.bf16.msra.mxu0 %v693
  %810 = vmatprep.subr.bf16.mxu0 0
  %811 = vmatpush1.bf16.msra.mxu0 %v694
  %812 = vmatprep.subr.bf16.mxu0 0
  %813 = vmatpush1.bf16.msra.mxu0 %v695
  %814 = vmatprep.subr.bf16.mxu0 0
  %815 = vmatpush1.bf16.msra.mxu0 %v696
  %816 = vmatprep.subr.bf16.mxu0 0
  %817 = vmatpush1.bf16.msra.mxu0 %v697
  %818 = vmatprep.subr.bf16.mxu0 0
  %819 = vmatpush1.bf16.msra.mxu0 %v698
  %820 = vmatprep.mubr.bf16.mxu0 %v439
  %821 = vmatmul.mubr.bf16.gmra.mrb[0].mxu0 %v438
  %v822 = vpop.f32.mrb[0].mxu0
  %v823 = vadd.f32 %v783, %v822
  %v824 = vpop.f32.mrb[0].mxu0
  %v825 = vpop.f32.mrb[0].mxu0
  %v826 = vpop.f32.mrb[0].mxu0
  %827 = vdwg.mxu0
  %828 = vmatprep.subr.bf16.mxu0 0
  %829 = vmatpush1.bf16.msra.mxu0 %v699
  %830 = vmatprep.subr.bf16.mxu0 0
  %831 = vmatpush1.bf16.msra.mxu0 %v700
  %832 = vmatprep.subr.bf16.mxu0 0
  %833 = vmatpush1.bf16.msra.mxu0 %v701
  %834 = vmatprep.subr.bf16.mxu0 0
  %835 = vmatpush1.bf16.msra.mxu0 %v702
  %836 = vmatprep.subr.bf16.mxu0 0
  %837 = vmatpush1.bf16.msra.mxu0 %v746
  %838 = vmatprep.subr.bf16.mxu0 0
  %839 = vmatpush1.bf16.msra.mxu0 0
  %840 = vmatprep.subr.bf16.mxu0 0
  %841 = vmatpush1.bf16.msra.mxu0 0
  %842 = vmatprep.subr.bf16.mxu0 0
  %843 = vmatpush1.bf16.msra.mxu0 0
  %844 = vmatprep.subr.bf16.mxu0 0
  %845 = vmatpush1.bf16.msra.mxu0 0
  %846 = vmatprep.subr.bf16.mxu0 0
  %847 = vmatpush1.bf16.msra.mxu0 0
  %848 = vmatprep.subr.bf16.mxu0 0
  %849 = vmatpush1.bf16.msra.mxu0 0
  %850 = vmatprep.subr.bf16.mxu0 0
  %851 = vmatpush1.bf16.msra.mxu0 0
  %852 = vmatprep.subr.bf16.mxu0 0
  %853 = vmatpush1.bf16.msra.mxu0 0
  %854 = vmatprep.subr.bf16.mxu0 0
  %855 = vmatpush1.bf16.msra.mxu0 0
  %856 = vmatprep.subr.bf16.mxu0 0
  %857 = vmatpush1.bf16.msra.mxu0 0
  %858 = vmatprep.subr.bf16.mxu0 0
  %859 = vmatpush1.bf16.msra.mxu0 0
  %860 = vmatprep.mubr.bf16.mxu0 0
  %861 = vmatmul.mubr.bf16.gmra.mrb[0].mxu0 %v742
  %v862 = vpop.f32.mrb[0].mxu0
  %v863 = vadd.f32 %v823, %v862
  %v864 = vpop.f32.mrb[0].mxu0
  %v865 = vpop.f32.mrb[0].mxu0
  %v866 = vpop.f32.mrb[0].mxu0
  %867 = vdwg.mxu0
  %vm868 = vcmp.gt.f32.partialorder %v863, 0.0
  %v869 = vmul.f32 %v863, 0.25
  %v870 = vsel %vm868, %v863, %v869
  %872 = vrot.lane.b32.xlu0 %v435, 112
  %v873 = vpop.permute.xlu0 %872
  %vm875 = vcmask 457728
  %v876 = vsel %vm875, %v870, %v873
  %v877 = vpack.c.bf16 %v876, %v876
  %v878 = vld [vmem:[%s4] sm:$0xf]
  %v879 = vld [vmem:[%s4 + $0x4] sm:$0xf]
  %v880 = vld [vmem:[%s4 + $0x8] sm:$0xf]
  %v881 = vld [vmem:[%s4 + $0xc] sm:$0xf]
  %v882 = vld [vmem:[%s4 + $0x10] sm:$0xf]
  %v883 = vld [vmem:[%s4 + $0x14] sm:$0xf]
  %v884 = vld [vmem:[%s4 + $0x18] sm:$0xf]
  %v885 = vld [vmem:[%s4 + $0x1c] sm:$0xf]
  %v886 = vld [vmem:[%s8 + $0x2] sm:$0x1]
  %v888 = vlaneseq
  %v889 = vshrl.u32 %v888, 7
  %v890 = vsub.s32 0, %v889
  %v891 = vrot.slane %v886, %v890
  %v901 = vunpack.c.l.b16 %v878
  %v902 = vunpack.c.l.b16 %v879
  %v903 = vunpack.c.l.b16 %v880
  %v904 = vunpack.c.l.b16 %v881
  %v905 = vunpack.c.l.b16 %v882
  %v906 = vunpack.c.l.b16 %v883
  %v907 = vunpack.c.l.b16 %v884
  %v908 = vunpack.c.l.b16 %v885
  %v909 = vpack.c.b16 %v902, %v901
  %v910 = vpack.c.b16 %v904, %v903
  %v911 = vpack.c.b16 %v906, %v905
  %v912 = vpack.c.b16 %v908, %v907
  %v918 = vsel %vm422, %v877, 0
  %920 = vmatprep.subr.bf16.mxu0 0
  %921 = vmatpush1.bf16.msra.mxu0 %v909
  %922 = vmatprep.subr.bf16.mxu0 0
  %923 = vmatpush1.bf16.msra.mxu0 %v910
  %924 = vmatprep.subr.bf16.mxu0 0
  %925 = vmatpush1.bf16.msra.mxu0 %v911
  %926 = vmatprep.subr.bf16.mxu0 0
  %927 = vmatpush1.bf16.msra.mxu0 %v912
  %928 = vmatprep.subr.bf16.mxu0 0
  %929 = vmatpush1.bf16.msra.mxu0 0
  %930 = vmatprep.subr.bf16.mxu0 0
  %931 = vmatpush1.bf16.msra.mxu0 0
  %932 = vmatprep.subr.bf16.mxu0 0
  %933 = vmatpush1.bf16.msra.mxu0 0
  %934 = vmatprep.subr.bf16.mxu0 0
  %935 = vmatpush1.bf16.msra.mxu0 0
  %936 = vmatprep.subr.bf16.mxu0 0
  %937 = vmatpush1.bf16.msra.mxu0 0
  %938 = vmatprep.subr.bf16.mxu0 0
  %939 = vmatpush1.bf16.msra.mxu0 0
  %940 = vmatprep.subr.bf16.mxu0 0
  %941 = vmatpush1.bf16.msra.mxu0 0
  %942 = vmatprep.subr.bf16.mxu0 0
  %943 = vmatpush1.bf16.msra.mxu0 0
  %944 = vmatprep.subr.bf16.mxu0 0
  %945 = vmatpush1.bf16.msra.mxu0 0
  %946 = vmatprep.subr.bf16.mxu0 0
  %947 = vmatpush1.bf16.msra.mxu0 0
  %948 = vmatprep.subr.bf16.mxu0 0
  %949 = vmatpush1.bf16.msra.mxu0 0
  %950 = vmatprep.subr.bf16.mxu0 0
  %951 = vmatpush1.bf16.msra.mxu0 0
  %952 = vmatprep.mubr.bf16.mxu0 0
  %953 = vmatmul.mubr.bf16.gmra.mrb[0].mxu0 %v918
  %v954 = vpop.f32.mrb[0].mxu0
  %v955 = vadd.f32 %v891, %v954
  %v956 = vpop.f32.mrb[0].mxu0
  %v957 = vpop.f32.mrb[0].mxu0
  %v958 = vpop.f32.mrb[0].mxu0
  %959 = vdwg.mxu0
  %vm960 = vcmp.gt.f32.partialorder %v955, 0.0
  %v961 = vmul.f32 %v955, 0.25
  %v962 = vsel %vm960, %v955, %v961
  %v963 = vpack.c.bf16 %v962, %v962
  %v964 = vld [vmem:[%s5] sm:$0xf]
  %v965 = vld [vmem:[%s5 + $0x4] sm:$0xf]
  %v966 = vld [vmem:[%s5 + $0x8] sm:$0xf]
  %v967 = vld [vmem:[%s5 + $0xc] sm:$0xf]
  %v968 = vld [vmem:[%s8 + $0x3] sm:$0x1]
  %v970 = vlaneseq
  %v971 = vshrl.u32 %v970, 7
  %v972 = vsub.s32 0, %v971
  %v973 = vrot.slane %v968, %v972
  %v979 = vunpack.c.l.b16 %v964
  %v980 = vunpack.c.l.b16 %v965
  %v981 = vunpack.c.l.b16 %v966
  %v982 = vunpack.c.l.b16 %v967
  %v983 = vpack.c.b16 %v980, %v979
  %v984 = vpack.c.b16 %v982, %v981
  %v988 = vsel %vm420, %v963, 0
  %990 = vmatprep.subr.bf16.mxu0 0
  %991 = vmatpush1.bf16.msra.mxu0 %v983
  %992 = vmatprep.subr.bf16.mxu0 0
  %993 = vmatpush1.bf16.msra.mxu0 %v984
  %994 = vmatprep.subr.bf16.mxu0 0
  %995 = vmatpush1.bf16.msra.mxu0 0
  %996 = vmatprep.subr.bf16.mxu0 0
  %997 = vmatpush1.bf16.msra.mxu0 0
  %998 = vmatprep.subr.bf16.mxu0 0
  %999 = vmatpush1.bf16.msra.mxu0 0
  %1000 = vmatprep.subr.bf16.mxu0 0
  %1001 = vmatpush1.bf16.msra.mxu0 0
  %1002 = vmatprep.subr.bf16.mxu0 0
  %1003 = vmatpush1.bf16.msra.mxu0 0
  %1004 = vmatprep.subr.bf16.mxu0 0
  %1005 = vmatpush1.bf16.msra.mxu0 0
  %1006 = vmatprep.subr.bf16.mxu0 0
  %1007 = vmatpush1.bf16.msra.mxu0 0
  %1008 = vmatprep.subr.bf16.mxu0 0
  %1009 = vmatpush1.bf16.msra.mxu0 0
  %1010 = vmatprep.subr.bf16.mxu0 0
  %1011 = vmatpush1.bf16.msra.mxu0 0
  %1012 = vmatprep.subr.bf16.mxu0 0
  %1013 = vmatpush1.bf16.msra.mxu0 0
  %1014 = vmatprep.subr.bf16.mxu0 0
  %1015 = vmatpush1.bf16.msra.mxu0 0
  %1016 = vmatprep.subr.bf16.mxu0 0
  %1017 = vmatpush1.bf16.msra.mxu0 0
  %1018 = vmatprep.subr.bf16.mxu0 0
  %1019 = vmatpush1.bf16.msra.mxu0 0
  %1020 = vmatprep.subr.bf16.mxu0 0
  %1021 = vmatpush1.bf16.msra.mxu0 0
  %1022 = vmatprep.mubr.bf16.mxu0 0
  %1023 = vmatmul.mubr.bf16.gmra.mrb[0].mxu0 %v988
  %v1024 = vpop.f32.mrb[0].mxu0
  %v1025 = vadd.f32 %v973, %v1024
  %v1026 = vpop.f32.mrb[0].mxu0
  %v1027 = vpop.f32.mrb[0].mxu0
  %v1028 = vpop.f32.mrb[0].mxu0
  %1029 = vdwg.mxu0
  %vm1030 = vcmp.gt.f32.partialorder %v1025, 0.0
  %v1031 = vmul.f32 %v1025, 0.25
  %v1032 = vsel %vm1030, %v1025, %v1031
  %v1033 = vsel %vm420, %v1032, %v962
  %v1034 = vpack.c.bf16 %v1033, %v1033
  %v1035 = vld [vmem:[%s6] sm:$0xff]
  %v1036 = vld [vmem:[%s6 + $0x8] sm:$0xff]
  %v1037 = vld [vmem:[%s6 + $0x10] sm:$0xff]
  %v1038 = vld [vmem:[%s6 + $0x18] sm:$0xff]
  %v1039 = vld [vmem:[%s6 + $0x20] sm:$0xff]
  %v1040 = vld [vmem:[%s6 + $0x28] sm:$0xff]
  %v1041 = vld [vmem:[%s8 + $0x4] sm:$0x3]
  %v1043 = vlaneseq
  %v1044 = vshrl.u32 %v1043, 7
  %v1045 = vsub.s32 0, %v1044
  %v1046 = vrot.slane %v1041, %v1045
  %v1047 = vlaneseq
  %v1048 = vshrl.u32 %v1047, 7
  %v1049 = vsub.s32 1, %v1048
  %v1050 = vrot.slane %v1041, %v1049
  %v1059 = vunpack.c.l.b16 %v1035
  %v1060 = vunpack.c.h.b16 %v1035
  %v1061 = vunpack.c.l.b16 %v1036
  %v1062 = vunpack.c.h.b16 %v1036
  %v1063 = vunpack.c.l.b16 %v1037
  %v1064 = vunpack.c.h.b16 %v1037
  %v1065 = vunpack.c.l.b16 %v1038
  %v1066 = vunpack.c.h.b16 %v1038
  %v1067 = vunpack.c.l.b16 %v1039
  %v1068 = vunpack.c.h.b16 %v1039
  %v1069 = vunpack.c.l.b16 %v1040
  %v1070 = vunpack.c.h.b16 %v1040
  %v1071 = vpack.c.b16 %v1061, %v1059
  %v1072 = vpack.c.b16 %v1062, %v1060
  %v1073 = vpack.c.b16 %v1065, %v1063
  %v1074 = vpack.c.b16 %v1066, %v1064
  %v1075 = vpack.c.b16 %v1069, %v1067
  %v1076 = vpack.c.b16 %v1070, %v1068
  %vm1083 = vcmask 392192
  %v1085 = vsel %vm1083, %v1034, 0
  %1087 = vmatprep.subr.bf16.mxu0 %v1072
  %1088 = vmatpush1.bf16.msra.mxu0 %v1071
  %1089 = vmatprep.subr.bf16.mxu0 %v1074
  %1090 = vmatpush1.bf16.msra.mxu0 %v1073
  %1091 = vmatprep.subr.bf16.mxu0 %v1076
  %1092 = vmatpush1.bf16.msra.mxu0 %v1075
  %1093 = vmatprep.subr.bf16.mxu0 0
  %1094 = vmatpush1.bf16.msra.mxu0 0
  %1095 = vmatprep.subr.bf16.mxu0 0
  %1096 = vmatpush1.bf16.msra.mxu0 0
  %1097 = vmatprep.subr.bf16.mxu0 0
  %1098 = vmatpush1.bf16.msra.mxu0 0
  %1099 = vmatprep.subr.bf16.mxu0 0
  %1100 = vmatpush1.bf16.msra.mxu0 0
  %1101 = vmatprep.subr.bf16.mxu0 0
  %1102 = vmatpush1.bf16.msra.mxu0 0
  %1103 = vmatprep.subr.bf16.mxu0 0
  %1104 = vmatpush1.bf16.msra.mxu0 0
  %1105 = vmatprep.subr.bf16.mxu0 0
  %1106 = vmatpush1.bf16.msra.mxu0 0
  %1107 = vmatprep.subr.bf16.mxu0 0
  %1108 = vmatpush1.bf16.msra.mxu0 0
  %1109 = vmatprep.subr.bf16.mxu0 0
  %1110 = vmatpush1.bf16.msra.mxu0 0
  %1111 = vmatprep.subr.bf16.mxu0 0
  %1112 = vmatpush1.bf16.msra.mxu0 0
  %1113 = vmatprep.subr.bf16.mxu0 0
  %1114 = vmatpush1.bf16.msra.mxu0 0
  %1115 = vmatprep.subr.bf16.mxu0 0
  %1116 = vmatpush1.bf16.msra.mxu0 0
  %1117 = vmatprep.subr.bf16.mxu0 0
  %1118 = vmatpush1.bf16.msra.mxu0 0
  %1119 = vmatprep.mubr.bf16.mxu0 0
  %1120 = vmatmul.mubr.bf16.gmra.mrb[0].mxu0 %v1085
  %v1121 = vpop.f32.mrb[0].mxu0
  %v1122 = vadd.f32 %v1046, %v1121
  %v1123 = vpop.f32.mrb[0].mxu0
  %v1124 = vadd.f32 %v1050, %v1123
  %v1125 = vpop.f32.mrb[0].mxu0
  %v1126 = vpop.f32.mrb[0].mxu0
  %1127 = vdwg.mxu0
  %1128 = vst [vmem:[%s10] sm:$0xff] %v1122
  %vm1129 = vcmp.gt.f32.partialorder %v1124, 0.0
  %v1130 = vmul.f32 %v1124, 0.25
  %v1131 = vsel %vm1129, %v1124, %v1130
  %v1132 = vpack.c.bf16 %v1131, %v1131
  %v1133 = vld [vmem:[%s7] sm:$0xff]
  %v1134 = vld [vmem:[%s7 + $0x8] sm:$0xff]
  %v1135 = vld [vmem:[%s7 + $0x10] sm:$0xff]
  %v1136 = vld [vmem:[%s7 + $0x18] sm:$0xff]
  %v1137 = vld [vmem:[%s7 + $0x20] sm:$0xff]
  %v1138 = vld [vmem:[%s7 + $0x28] sm:$0xff]
  %v1139 = vld [vmem:[%s7 + $0x30] sm:$0xff]
  %v1140 = vld [vmem:[%s7 + $0x38] sm:$0xff]
  %v1141 = vld [vmem:[%s7 + $0x40] sm:$0xff]
  %v1142 = vld [vmem:[%s7 + $0x48] sm:$0xff]
  %v1143 = vld [vmem:[%s7 + $0x50] sm:$0xff]
  %v1144 = vld [vmem:[%s7 + $0x58] sm:$0xff]
  %v1145 = vld [vmem:[%s7 + $0x60] sm:$0xff]
  %v1146 = vld [vmem:[%s7 + $0x68] sm:$0xff]
  %v1147 = vld [vmem:[%s7 + $0x70] sm:$0xff]
  %v1148 = vld [vmem:[%s7 + $0x78] sm:$0xff]
  %v1149 = vld [vmem:[%s7 + $0x80] sm:$0xff]
  %v1150 = vld [vmem:[%s7 + $0x88] sm:$0xff]
  %v1151 = vld [vmem:[%s7 + $0x90] sm:$0xff]
  %v1152 = vld [vmem:[%s7 + $0x98] sm:$0xff]
  %v1153 = vld [vmem:[%s7 + $0xa0] sm:$0xff]
  %v1154 = vld [vmem:[%s7 + $0xa8] sm:$0xff]
  %v1155 = vld [vmem:[%s7 + $0xb0] sm:$0xff]
  %v1156 = vld [vmem:[%s7 + $0xb8] sm:$0xff]
  %v1157 = vld [vmem:[%s7 + $0xc0] sm:$0xff]
  %v1158 = vld [vmem:[%s7 + $0xc8] sm:$0xff]
  %v1159 = vld [vmem:[%s7 + $0xd0] sm:$0xff]
  %v1160 = vld [vmem:[%s7 + $0xd8] sm:$0xff]
  %v1161 = vld [vmem:[%s7 + $0xe0] sm:$0xff]
  %v1162 = vld [vmem:[%s7 + $0xe8] sm:$0xff]
  %v1163 = vld [vmem:[%s7 + $0xf0] sm:$0xff]
  %v1164 = vld [vmem:[%s7 + $0xf8] sm:$0xff]
  %v1165 = vld [vmem:[%s8 + $0x6] sm:$0xff]
  %v1167 = vlaneseq
  %v1168 = vshrl.u32 %v1167, 7
  %v1169 = vsub.s32 0, %v1168
  %v1170 = vrot.slane %v1165, %v1169
  %v1171 = vlaneseq
  %v1172 = vshrl.u32 %v1171, 7
  %v1173 = vsub.s32 1, %v1172
  %v1174 = vrot.slane %v1165, %v1173
  %v1175 = vlaneseq
  %v1176 = vshrl.u32 %v1175, 7
  %v1177 = vsub.s32 2, %v1176
  %v1178 = vrot.slane %v1165, %v1177
  %v1179 = vlaneseq
  %v1180 = vshrl.u32 %v1179, 7
  %v1181 = vsub.s32 3, %v1180
  %v1182 = vrot.slane %v1165, %v1181
  %v1183 = vlaneseq
  %v1184 = vshrl.u32 %v1183, 7
  %v1185 = vsub.s32 4, %v1184
  %v1186 = vrot.slane %v1165, %v1185
  %v1187 = vlaneseq
  %v1188 = vshrl.u32 %v1187, 7
  %v1189 = vsub.s32 5, %v1188
  %v1190 = vrot.slane %v1165, %v1189
  %v1191 = vlaneseq
  %v1192 = vshrl.u32 %v1191, 7
  %v1193 = vsub.s32 6, %v1192
  %v1194 = vrot.slane %v1165, %v1193
  %v1195 = vlaneseq
  %v1196 = vshrl.u32 %v1195, 7
  %v1197 = vsub.s32 7, %v1196
  %v1198 = vrot.slane %v1165, %v1197
  %v1239 = vunpack.c.l.b16 %v1133
  %v1240 = vunpack.c.h.b16 %v1133
  %v1241 = vunpack.c.l.b16 %v1134
  %v1242 = vunpack.c.h.b16 %v1134
  %v1243 = vunpack.c.l.b16 %v1135
  %v1244 = vunpack.c.h.b16 %v1135
  %v1245 = vunpack.c.l.b16 %v1136
  %v1246 = vunpack.c.h.b16 %v1136
  %v1247 = vunpack.c.l.b16 %v1137
  %v1248 = vunpack.c.h.b16 %v1137
  %v1249 = vunpack.c.l.b16 %v1138
  %v1250 = vunpack.c.h.b16 %v1138
  %v1251 = vunpack.c.l.b16 %v1139
  %v1252 = vunpack.c.h.b16 %v1139
  %v1253 = vunpack.c.l.b16 %v1140
  %v1254 = vunpack.c.h.b16 %v1140
  %v1255 = vunpack.c.l.b16 %v1141
  %v1256 = vunpack.c.h.b16 %v1141
  %v1257 = vunpack.c.l.b16 %v1142
  %v1258 = vunpack.c.h.b16 %v1142
  %v1259 = vunpack.c.l.b16 %v1143
  %v1260 = vunpack.c.h.b16 %v1143
  %v1261 = vunpack.c.l.b16 %v1144
  %v1262 = vunpack.c.h.b16 %v1144
  %v1263 = vunpack.c.l.b16 %v1145
  %v1264 = vunpack.c.h.b16 %v1145
  %v1265 = vunpack.c.l.b16 %v1146
  %v1266 = vunpack.c.h.b16 %v1146
  %v1267 = vunpack.c.l.b16 %v1147
  %v1268 = vunpack.c.h.b16 %v1147
  %v1269 = vunpack.c.l.b16 %v1148
  %v1270 = vunpack.c.h.b16 %v1148
  %v1271 = vunpack.c.l.b16 %v1149
  %v1272 = vunpack.c.h.b16 %v1149
  %v1273 = vunpack.c.l.b16 %v1150
  %v1274 = vunpack.c.h.b16 %v1150
  %v1275 = vunpack.c.l.b16 %v1151
  %v1276 = vunpack.c.h.b16 %v1151
  %v1277 = vunpack.c.l.b16 %v1152
  %v1278 = vunpack.c.h.b16 %v1152
  %v1279 = vunpack.c.l.b16 %v1153
  %v1280 = vunpack.c.h.b16 %v1153
  %v1281 = vunpack.c.l.b16 %v1154
  %v1282 = vunpack.c.h.b16 %v1154
  %v1283 = vunpack.c.l.b16 %v1155
  %v1284 = vunpack.c.h.b16 %v1155
  %v1285 = vunpack.c.l.b16 %v1156
  %v1286 = vunpack.c.h.b16 %v1156
  %v1287 = vunpack.c.l.b16 %v1157
  %v1288 = vunpack.c.h.b16 %v1157
  %v1289 = vunpack.c.l.b16 %v1158
  %v1290 = vunpack.c.h.b16 %v1158
  %v1291 = vunpack.c.l.b16 %v1159
  %v1292 = vunpack.c.h.b16 %v1159
  %v1293 = vunpack.c.l.b16 %v1160
  %v1294 = vunpack.c.h.b16 %v1160
  %v1295 = vunpack.c.l.b16 %v1161
  %v1296 = vunpack.c.h.b16 %v1161
  %v1297 = vunpack.c.l.b16 %v1162
  %v1298 = vunpack.c.h.b16 %v1162
  %v1299 = vunpack.c.l.b16 %v1163
  %v1300 = vunpack.c.h.b16 %v1163
  %v1301 = vunpack.c.l.b16 %v1164
  %v1302 = vunpack.c.h.b16 %v1164
  %v1303 = vpack.c.b16 %v1247, %v1239
  %v1304 = vpack.c.b16 %v1248, %v1240
  %v1305 = vpack.c.b16 %v1249, %v1241
  %v1306 = vpack.c.b16 %v1250, %v1242
  %v1307 = vpack.c.b16 %v1251, %v1243
  %v1308 = vpack.c.b16 %v1252, %v1244
  %v1309 = vpack.c.b16 %v1253, %v1245
  %v1310 = vpack.c.b16 %v1254, %v1246
  %v1311 = vpack.c.b16 %v1263, %v1255
  %v1312 = vpack.c.b16 %v1264, %v1256
  %v1313 = vpack.c.b16 %v1265, %v1257
  %v1314 = vpack.c.b16 %v1266, %v1258
  %v1315 = vpack.c.b16 %v1267, %v1259
  %v1316 = vpack.c.b16 %v1268, %v1260
  %v1317 = vpack.c.b16 %v1269, %v1261
  %v1318 = vpack.c.b16 %v1270, %v1262
  %v1319 = vpack.c.b16 %v1279, %v1271
  %v1320 = vpack.c.b16 %v1280, %v1272
  %v1321 = vpack.c.b16 %v1281, %v1273
  %v1322 = vpack.c.b16 %v1282, %v1274
  %v1323 = vpack.c.b16 %v1283, %v1275
  %v1324 = vpack.c.b16 %v1284, %v1276
  %v1325 = vpack.c.b16 %v1285, %v1277
  %v1326 = vpack.c.b16 %v1286, %v1278
  %v1327 = vpack.c.b16 %v1295, %v1287
  %v1328 = vpack.c.b16 %v1296, %v1288
  %v1329 = vpack.c.b16 %v1297, %v1289
  %v1330 = vpack.c.b16 %v1298, %v1290
  %v1331 = vpack.c.b16 %v1299, %v1291
  %v1332 = vpack.c.b16 %v1300, %v1292
  %v1333 = vpack.c.b16 %v1301, %v1293
  %v1334 = vpack.c.b16 %v1302, %v1294
  %v1368 = vsel %vm422, %v1132, 0
  %1370 = vmatprep.subr.bf16.mxu0 %v1304
  %1371 = vmatpush1.bf16.msra.mxu0 %v1303
  %1372 = vmatprep.subr.bf16.mxu0 %v1312
  %1373 = vmatpush1.bf16.msra.mxu0 %v1311
  %1374 = vmatprep.subr.bf16.mxu0 %v1320
  %1375 = vmatpush1.bf16.msra.mxu0 %v1319
  %1376 = vmatprep.subr.bf16.mxu0 %v1328
  %1377 = vmatpush1.bf16.msra.mxu0 %v1327
  %1378 = vmatprep.subr.bf16.mxu0 0
  %1379 = vmatpush1.bf16.msra.mxu0 0
  %1380 = vmatprep.subr.bf16.mxu0 0
  %1381 = vmatpush1.bf16.msra.mxu0 0
  %1382 = vmatprep.subr.bf16.mxu0 0
  %1383 = vmatpush1.bf16.msra.mxu0 0
  %1384 = vmatprep.subr.bf16.mxu0 0
  %1385 = vmatpush1.bf16.msra.mxu0 0
  %1386 = vmatprep.subr.bf16.mxu0 0
  %1387 = vmatpush1.bf16.msra.mxu0 0
  %1388 = vmatprep.subr.bf16.mxu0 0
  %1389 = vmatpush1.bf16.msra.mxu0 0
  %1390 = vmatprep.subr.bf16.mxu0 0
  %1391 = vmatpush1.bf16.msra.mxu0 0
  %1392 = vmatprep.subr.bf16.mxu0 0
  %1393 = vmatpush1.bf16.msra.mxu0 0
  %1394 = vmatprep.subr.bf16.mxu0 0
  %1395 = vmatpush1.bf16.msra.mxu0 0
  %1396 = vmatprep.subr.bf16.mxu0 0
  %1397 = vmatpush1.bf16.msra.mxu0 0
  %1398 = vmatprep.subr.bf16.mxu0 0
  %1399 = vmatpush1.bf16.msra.mxu0 0
  %1400 = vmatprep.subr.bf16.mxu0 0
  %1401 = vmatpush1.bf16.msra.mxu0 0
  %1402 = vmatprep.mubr.bf16.mxu0 0
  %1403 = vmatmul.mubr.bf16.gmra.mrb[0].mxu0 %v1368
  %v1404 = vpop.f32.mrb[0].mxu0
  %v1405 = vadd.f32 %v1170, %v1404
  %v1406 = vpop.f32.mrb[0].mxu0
  %v1407 = vadd.f32 %v1174, %v1406
  %v1408 = vpop.f32.mrb[0].mxu0
  %v1409 = vpop.f32.mrb[0].mxu0
  %1410 = vdwg.mxu0
  %1411 = vmatprep.subr.bf16.mxu0 %v1306
  %1412 = vmatpush1.bf16.msra.mxu0 %v1305
  %1413 = vmatprep.subr.bf16.mxu0 %v1314
  %1414 = vmatpush1.bf16.msra.mxu0 %v1313
  %1415 = vmatprep.subr.bf16.mxu0 %v1322
  %1416 = vmatpush1.bf16.msra.mxu0 %v1321
  %1417 = vmatprep.subr.bf16.mxu0 %v1330
  %1418 = vmatpush1.bf16.msra.mxu0 %v1329
  %1419 = vmatprep.subr.bf16.mxu0 0
  %1420 = vmatpush1.bf16.msra.mxu0 0
  %1421 = vmatprep.subr.bf16.mxu0 0
  %1422 = vmatpush1.bf16.msra.mxu0 0
  %1423 = vmatprep.subr.bf16.mxu0 0
  %1424 = vmatpush1.bf16.msra.mxu0 0
  %1425 = vmatprep.subr.bf16.mxu0 0
  %1426 = vmatpush1.bf16.msra.mxu0 0
  %1427 = vmatprep.subr.bf16.mxu0 0
  %1428 = vmatpush1.bf16.msra.mxu0 0
  %1429 = vmatprep.subr.bf16.mxu0 0
  %1430 = vmatpush1.bf16.msra.mxu0 0
  %1431 = vmatprep.subr.bf16.mxu0 0
  %1432 = vmatpush1.bf16.msra.mxu0 0
  %1433 = vmatprep.subr.bf16.mxu0 0
  %1434 = vmatpush1.bf16.msra.mxu0 0
  %1435 = vmatprep.subr.bf16.mxu0 0
  %1436 = vmatpush1.bf16.msra.mxu0 0
  %1437 = vmatprep.subr.bf16.mxu0 0
  %1438 = vmatpush1.bf16.msra.mxu0 0
  %1439 = vmatprep.subr.bf16.mxu0 0
  %1440 = vmatpush1.bf16.msra.mxu0 0
  %1441 = vmatprep.subr.bf16.mxu0 0
  %1442 = vmatpush1.bf16.msra.mxu0 0
  %1443 = vmatprep.mubr.bf16.mxu0 0
  %1444 = vmatmul.mubr.bf16.gmra.mrb[0].mxu0 %v1368
  %v1445 = vpop.f32.mrb[0].mxu0
  %v1446 = vadd.f32 %v1178, %v1445
  %v1447 = vpop.f32.mrb[0].mxu0
  %v1448 = vadd.f32 %v1182, %v1447
  %v1449 = vpop.f32.mrb[0].mxu0
  %v1450 = vpop.f32.mrb[0].mxu0
  %1451 = vdwg.mxu0
  %1452 = vmatprep.subr.bf16.mxu0 %v1308
  %1453 = vmatpush1.bf16.msra.mxu0 %v1307
  %1454 = vmatprep.subr.bf16.mxu0 %v1316
  %1455 = vmatpush1.bf16.msra.mxu0 %v1315
  %1456 = vmatprep.subr.bf16.mxu0 %v1324
  %1457 = vmatpush1.bf16.msra.mxu0 %v1323
  %1458 = vmatprep.subr.bf16.mxu0 %v1332
  %1459 = vmatpush1.bf16.msra.mxu0 %v1331
  %1460 = vmatprep.subr.bf16.mxu0 0
  %1461 = vmatpush1.bf16.msra.mxu0 0
  %1462 = vmatprep.subr.bf16.mxu0 0
  %1463 = vmatpush1.bf16.msra.mxu0 0
  %1464 = vmatprep.subr.bf16.mxu0 0
  %1465 = vmatpush1.bf16.msra.mxu0 0
  %1466 = vmatprep.subr.bf16.mxu0 0
  %1467 = vmatpush1.bf16.msra.mxu0 0
  %1468 = vmatprep.subr.bf16.mxu0 0
  %1469 = vmatpush1.bf16.msra.mxu0 0
  %1470 = vmatprep.subr.bf16.mxu0 0
  %1471 = vmatpush1.bf16.msra.mxu0 0
  %1472 = vmatprep.subr.bf16.mxu0 0
  %1473 = vmatpush1.bf16.msra.mxu0 0
  %1474 = vmatprep.subr.bf16.mxu0 0
  %1475 = vmatpush1.bf16.msra.mxu0 0
  %1476 = vmatprep.subr.bf16.mxu0 0
  %1477 = vmatpush1.bf16.msra.mxu0 0
  %1478 = vmatprep.subr.bf16.mxu0 0
  %1479 = vmatpush1.bf16.msra.mxu0 0
  %1480 = vmatprep.subr.bf16.mxu0 0
  %1481 = vmatpush1.bf16.msra.mxu0 0
  %1482 = vmatprep.subr.bf16.mxu0 0
  %1483 = vmatpush1.bf16.msra.mxu0 0
  %1484 = vmatprep.mubr.bf16.mxu0 0
  %1485 = vmatmul.mubr.bf16.gmra.mrb[0].mxu0 %v1368
  %v1486 = vpop.f32.mrb[0].mxu0
  %v1487 = vadd.f32 %v1186, %v1486
  %v1488 = vpop.f32.mrb[0].mxu0
  %v1489 = vadd.f32 %v1190, %v1488
  %v1490 = vpop.f32.mrb[0].mxu0
  %v1491 = vpop.f32.mrb[0].mxu0
  %1492 = vdwg.mxu0
  %1493 = vmatprep.subr.bf16.mxu0 %v1310
  %1494 = vmatpush1.bf16.msra.mxu0 %v1309
  %1495 = vmatprep.subr.bf16.mxu0 %v1318
  %1496 = vmatpush1.bf16.msra.mxu0 %v1317
  %1497 = vmatprep.subr.bf16.mxu0 %v1326
  %1498 = vmatpush1.bf16.msra.mxu0 %v1325
  %1499 = vmatprep.subr.bf16.mxu0 %v1334
  %1500 = vmatpush1.bf16.msra.mxu0 %v1333
  %1501 = vmatprep.subr.bf16.mxu0 0
  %1502 = vmatpush1.bf16.msra.mxu0 0
  %1503 = vmatprep.subr.bf16.mxu0 0
  %1504 = vmatpush1.bf16.msra.mxu0 0
  %1505 = vmatprep.subr.bf16.mxu0 0
  %1506 = vmatpush1.bf16.msra.mxu0 0
  %1507 = vmatprep.subr.bf16.mxu0 0
  %1508 = vmatpush1.bf16.msra.mxu0 0
  %1509 = vmatprep.subr.bf16.mxu0 0
  %1510 = vmatpush1.bf16.msra.mxu0 0
  %1511 = vmatprep.subr.bf16.mxu0 0
  %1512 = vmatpush1.bf16.msra.mxu0 0
  %1513 = vmatprep.subr.bf16.mxu0 0
  %1514 = vmatpush1.bf16.msra.mxu0 0
  %1515 = vmatprep.subr.bf16.mxu0 0
  %1516 = vmatpush1.bf16.msra.mxu0 0
  %1517 = vmatprep.subr.bf16.mxu0 0
  %1518 = vmatpush1.bf16.msra.mxu0 0
  %1519 = vmatprep.subr.bf16.mxu0 0
  %1520 = vmatpush1.bf16.msra.mxu0 0
  %1521 = vmatprep.subr.bf16.mxu0 0
  %1522 = vmatpush1.bf16.msra.mxu0 0
  %1523 = vmatprep.subr.bf16.mxu0 0
  %1524 = vmatpush1.bf16.msra.mxu0 0
  %1525 = vmatprep.mubr.bf16.mxu0 0
  %1526 = vmatmul.mubr.bf16.gmra.mrb[0].mxu0 %v1368
  %v1527 = vpop.f32.mrb[0].mxu0
  %v1528 = vadd.f32 %v1194, %v1527
  %v1529 = vpop.f32.mrb[0].mxu0
  %v1530 = vadd.f32 %v1198, %v1529
  %v1531 = vpop.f32.mrb[0].mxu0
  %v1532 = vpop.f32.mrb[0].mxu0
  %1533 = vdwg.mxu0
  %1534 = vst [vmem:[%s9] sm:$0xff] %v1405
  %1535 = vst [vmem:[%s9 + $0x8] sm:$0xff] %v1407
  %1536 = vst [vmem:[%s9 + $0x10] sm:$0xff] %v1446
  %1537 = vst [vmem:[%s9 + $0x18] sm:$0xff] %v1448
  %1538 = vst [vmem:[%s9 + $0x20] sm:$0xff] %v1487
  %1539 = vst [vmem:[%s9 + $0x28] sm:$0xff] %v1489
  %1540 = vst [vmem:[%s9 + $0x30] sm:$0xff] %v1528
  %1541 = vst [vmem:[%s9 + $0x38] sm:$0xff] %v1530
  // Predicated region
  $region38: #{in_and_out_forward.1} parent=0 // pred_check
    _
  $region39: #{in_and_out_forward.1} parent=0 // pred_check_branch
    %1543 = sbr.rel (0) target = $region41
  $region40: #{in_and_out_forward.1} parent=0 // pred_region
    _
  $region41: #{in_and_out_forward.1} parent=0 // pred_fallthru
    _
  // Predicated region
  $region42: #{in_and_out_forward.1} parent=0 // pred_check
    _
  $region43: #{in_and_out_forward.1} parent=0 // pred_check_branch
    %1545 = sbr.rel (0) target = $region45
  $region44: #{in_and_out_forward.1} parent=0 // pred_region
    _
  $region45: #{in_and_out_forward.1} parent=0 // pred_fallthru
    _
  // Predicated region
  $region46: #{in_and_out_forward.1} parent=0 // pred_check
    _
  $region47: #{in_and_out_forward.1} parent=0 // pred_check_branch
    %1547 = sbr.rel (0) target = $region49
  $region48: #{in_and_out_forward.1} parent=0 // pred_region
    _
  $region49: #{in_and_out_forward.1} parent=0 // pred_fallthru
    _
  // Predicated region
  $region50: #{in_and_out_forward.1} parent=0 // pred_check
    _
  $region51: #{in_and_out_forward.1} parent=0 // pred_check_branch
    %1549 = sbr.rel (0) target = $region53
  $region52: #{in_and_out_forward.1} parent=0 // pred_region
    _
  $region53: #{in_and_out_forward.1} parent=0 // pred_fallthru
    _

</llo_original>
